<compile_context>
chip_gen: v7x
topology: tpu7x:2x2x1
jax: 0.10.0
libtpu: 0.0.40
codegen_flags: <defaults>
</compile_context>

<pallas_src>
import jax
import jax.numpy as jnp
from jax.experimental import pallas as pl
from jax.experimental.pallas import tpu as pltpu


def mlp_kernel(x_ref, w1_ref, b1_ref, w2_ref, b2_ref,
               w3_ref, b3_ref, w4_ref, b4_ref, o_ref, acc_ref):
    k = pl.program_id(1)

    @pl.when(k == 0)
    def _():
        acc_ref[...] = jnp.zeros_like(acc_ref)

    # fc1 partial product: (bm, tk) bf16 @ (tk, 120) bf16 -> f32 accumulate.
    acc_ref[...] += jnp.dot(x_ref[...], w1_ref[...],
                            preferred_element_type=jnp.float32)

    @pl.when(k == pl.num_programs(1) - 1)
    def _():
        # fc1 bias + relu
        h = jnp.maximum(acc_ref[...] + b1_ref[...], 0.0)
        # fc2 + relu
        h = jnp.dot(h, w2_ref[...], preferred_element_type=jnp.float32)
        h = jnp.maximum(h + b2_ref[...], 0.0)
        # fc3 + relu
        h = jnp.dot(h, w3_ref[...], preferred_element_type=jnp.float32)
        h = jnp.maximum(h + b3_ref[...], 0.0)
        # fc4 (no activation)
        h = jnp.dot(h, w4_ref[...], preferred_element_type=jnp.float32)
        o_ref[...] = (h + b4_ref[...]).astype(o_ref.dtype)


def mlp_forward(x, params, *, tk=2048, bm_max=128):
    """x: (B, 3, 64, 64) float32 -> (B, 2) float32."""
    B = x.shape[0]
    x_flat = x.reshape(B, -1)          # (B, 12288), same ordering as torch.flatten(x, 1)
    K = x_flat.shape[1]

    (w1, b1), (w2, b2), (w3, b3), (w4, b4) = params
    H1 = w1.shape[1]                   # 120
    NOUT = w4.shape[1]                 # 2

    # fc1 operands in bf16 (accumulation stays f32 in-kernel). In production W1
    # would be stored in bf16; casting here is a cheap one-off XLA op.
    x_bf16 = x_flat.astype(jnp.bfloat16)
    w1_bf16 = w1.astype(jnp.bfloat16)

    # Batch tiling: single full-B tile for small batches, 128-row tiles otherwise.
    if B <= bm_max:
        bm = B
    else:
        bm = bm_max
        pad = (-B) % bm
        if pad:
            x_bf16 = jnp.pad(x_bf16, ((0, pad), (0, 0)))
    Bp = x_bf16.shape[0]
    nb = Bp // bm

    assert K % tk == 0, "contraction dim must be a multiple of tk"
    nk = K // tk

    def const_spec(arr):
        return pl.BlockSpec(arr.shape, lambda b, k, _nd=arr.ndim: (0,) * _nd)

    out = pl.pallas_call(
        mlp_kernel,
        out_shape=jax.ShapeDtypeStruct((Bp, NOUT), jnp.float32),
        grid=(nb, nk),
        in_specs=[
            pl.BlockSpec((bm, tk), lambda b, k: (b, k)),   # x tile (streamed over K)
            pl.BlockSpec((tk, H1), lambda b, k: (k, 0)),   # W1 tile (streamed over K)
            const_spec(b1),                                # small layers: DMA'd once
            const_spec(w2), const_spec(b2),
            const_spec(w3), const_spec(b3),
            const_spec(w4), const_spec(b4),
        ],
        out_specs=pl.BlockSpec((bm, NOUT), lambda b, k: (b, 0)),
        scratch_shapes=[pltpu.VMEM((bm, H1), jnp.float32)],   # fc1 accumulator
        compiler_params=pltpu.CompilerParams(
            dimension_semantics=("parallel", "arbitrary"),
        ),
    )(x_bf16, w1_bf16, b1, w2, b2, w3, b3, w4, b4)
    return out[:B]


def init_params(key):
    """Deterministic init matching nn.Linear's U(-1/sqrt(fan_in), 1/sqrt(fan_in)).
    Weights stored as (in_features, out_features); biases as (1, out_features)."""
    dims = [(64 * 64 * 3, 120), (120, 84), (84, 32), (32, 2)]
    params = []
    for (fan_in, fan_out) in dims:
        key, kw, kb = jax.random.split(key, 3)
        bound = 1.0 / jnp.sqrt(fan_in)
        w = jax.random.uniform(kw, (fan_in, fan_out), jnp.float32, -bound, bound)
        b = jax.random.uniform(kb, (1, fan_out), jnp.float32, -bound, bound)
        params.append((w, b))
    return params


def mlp_reference(x, params):
    """Pure-JAX f32 reference matching the PyTorch module."""
    h = x.reshape(x.shape[0], -1)
    (w1, b1), (w2, b2), (w3, b3), (w4, b4) = params
    h = jnp.maximum(h @ w1 + b1, 0.0)
    h = jnp.maximum(h @ w2 + b2, 0.0)
    h = jnp.maximum(h @ w3 + b3, 0.0)
    return h @ w4 + b4


if __name__ == "__main__":
    key = jax.random.PRNGKey(0)
    key, kx = jax.random.split(key)

    # fc1 = Linear(64*64*3, 120) implies NCHW input (B, 3, 64, 64); small batch.
    x = jax.random.normal(kx, (2, 3, 64, 64), jnp.float32)
    params = init_params(key)

    out = mlp_forward(x, params)
    out = jax.block_until_ready(out)
    assert out.shape == (2, 2)

    # fc1 runs with bf16 inputs (f32 accumulation), so compare against the f32
    # reference with a correspondingly looser tolerance (estimated error ~1e-3).
    ref = mlp_reference(x, params)
    err = jnp.max(jnp.abs(out - ref))
    assert jnp.allclose(out, ref, atol=2e-2, rtol=2e-2), f"mismatch vs reference (max abs err {err})"

    print("KERNEL_OK")
</pallas_src>

<mosaic_0001>
module attributes {stable_mosaic.version = 11 : i64} {
  func.func @mlp_kernel(%arg0: i32, %arg1: i32, %arg2: memref<2x2048xbf16, #tpu.memory_space<vmem>>, %arg3: memref<2048x120xbf16, #tpu.memory_space<vmem>>, %arg4: memref<1x120xf32, #tpu.memory_space<vmem>>, %arg5: memref<120x84xf32, #tpu.memory_space<vmem>>, %arg6: memref<1x84xf32, #tpu.memory_space<vmem>>, %arg7: memref<84x32xf32, #tpu.memory_space<vmem>>, %arg8: memref<1x32xf32, #tpu.memory_space<vmem>>, %arg9: memref<32x2xf32, #tpu.memory_space<vmem>>, %arg10: memref<1x2xf32, #tpu.memory_space<vmem>>, %arg11: memref<2x2xf32, #tpu.memory_space<vmem>>, %arg12: memref<2x120xf32, #tpu.memory_space<vmem>>) attributes {dimension_semantics = [#tpu.dimension_semantics<parallel>, #tpu.dimension_semantics<arbitrary>], iteration_bounds = array<i64: 1, 6>, scalar_prefetch = 0 : i64, scratch_operands = 1 : i64, tpu.core_type = #tpu.core_type<tc>, window_params = [{transform_indices = @transform_0, window_bounds = array<i64: 2, 2048>}, {transform_indices = @transform_1, window_bounds = array<i64: 2048, 120>}, {pipeline_mode = #tpu.pipeline_mode<synchronous>, transform_indices = @transform_2, window_bounds = array<i64: 1, 120>}, {pipeline_mode = #tpu.pipeline_mode<synchronous>, transform_indices = @transform_3, window_bounds = array<i64: 120, 84>}, {pipeline_mode = #tpu.pipeline_mode<synchronous>, transform_indices = @transform_4, window_bounds = array<i64: 1, 84>}, {pipeline_mode = #tpu.pipeline_mode<synchronous>, transform_indices = @transform_5, window_bounds = array<i64: 84, 32>}, {pipeline_mode = #tpu.pipeline_mode<synchronous>, transform_indices = @transform_6, window_bounds = array<i64: 1, 32>}, {pipeline_mode = #tpu.pipeline_mode<synchronous>, transform_indices = @transform_7, window_bounds = array<i64: 32, 2>}, {pipeline_mode = #tpu.pipeline_mode<synchronous>, transform_indices = @transform_8, window_bounds = array<i64: 1, 2>}, {transform_indices = @transform_9, window_bounds = array<i64: 2, 2>}]} {
    %c0_i32 = arith.constant 0 : i32
    %0 = arith.cmpi eq, %arg1, %c0_i32 : i32
    %1 = arith.extui %0 : i1 to i32
    %c0_i32_0 = arith.constant 0 : i32
    %2 = arith.cmpi ne, %1, %c0_i32_0 : i32
    scf.if %2 {
      %cst_9 = arith.constant 0.000000e+00 : f32
      %12 = vector.broadcast %cst_9 : f32 to vector<2x120xf32>
      %c0_10 = arith.constant 0 : index
      %c0_11 = arith.constant 0 : index
      %13 = vector.load %arg12[%c0_10, %c0_11] : memref<2x120xf32, #tpu.memory_space<vmem>>, vector<2x120xf32>
      tpu.vector_store %arg12[%c0_10, %c0_11], %12 {strides = array<i32>} : memref<2x120xf32, #tpu.memory_space<vmem>>, vector<2x120xf32>,
    } else {
    }
    %c0 = arith.constant 0 : index
    %c0_1 = arith.constant 0 : index
    %3 = vector.load %arg12[%c0, %c0_1] : memref<2x120xf32, #tpu.memory_space<vmem>>, vector<2x120xf32>
    %c0_2 = arith.constant 0 : index
    %c0_3 = arith.constant 0 : index
    %4 = vector.load %arg2[%c0_2, %c0_3] : memref<2x2048xbf16, #tpu.memory_space<vmem>>, vector<2x2048xbf16>
    %c0_4 = arith.constant 0 : index
    %c0_5 = arith.constant 0 : index
    %5 = vector.load %arg3[%c0_4, %c0_5] : memref<2048x120xbf16, #tpu.memory_space<vmem>>, vector<2048x120xbf16>
    %cst = arith.constant dense<0.000000e+00> : vector<2x120xf32>
    %6 = tpu.matmul %4, %5, %cst {dimension_numbers = #tpu.dot_dimension_numbers<[1], [0], [0], [1], [0, 0, 1, 1], [], []>} : vector<2x2048xbf16>, vector<2048x120xbf16>, vector<2x120xf32> -> vector<2x120xf32>
    %7 = arith.addf %3, %6 : vector<2x120xf32>
    %c0_6 = arith.constant 0 : index
    %c0_7 = arith.constant 0 : index
    %8 = vector.load %arg12[%c0_6, %c0_7] : memref<2x120xf32, #tpu.memory_space<vmem>>, vector<2x120xf32>
    tpu.vector_store %arg12[%c0_6, %c0_7], %7 {strides = array<i32>} : memref<2x120xf32, #tpu.memory_space<vmem>>, vector<2x120xf32>,
    %c5_i32 = arith.constant 5 : i32
    %9 = arith.cmpi eq, %arg1, %c5_i32 : i32
    %10 = arith.extui %9 : i1 to i32
    %c0_i32_8 = arith.constant 0 : i32
    %11 = arith.cmpi ne, %10, %c0_i32_8 : i32
    scf.if %11 {
      %c0_9 = arith.constant 0 : index
      %c0_10 = arith.constant 0 : index
      %12 = vector.load %arg12[%c0_9, %c0_10] : memref<2x120xf32, #tpu.memory_space<vmem>>, vector<2x120xf32>
      %c0_11 = arith.constant 0 : index
      %c0_12 = arith.constant 0 : index
      %13 = vector.load %arg4[%c0_11, %c0_12] : memref<1x120xf32, #tpu.memory_space<vmem>>, vector<1x120xf32>
      %14 = vector.broadcast %13 : vector<1x120xf32> to vector<2x120xf32>
      %15 = arith.addf %12, %14 : vector<2x120xf32>
      %cst_13 = arith.constant 0.000000e+00 : f32
      %16 = vector.broadcast %cst_13 : f32 to vector<2x120xf32>
      %17 = arith.maximumf %15, %16 : vector<2x120xf32>
      %c0_14 = arith.constant 0 : index
      %c0_15 = arith.constant 0 : index
      %18 = vector.load %arg5[%c0_14, %c0_15] : memref<120x84xf32, #tpu.memory_space<vmem>>, vector<120x84xf32>
      %cst_16 = arith.constant dense<0.000000e+00> : vector<2x84xf32>
      %19 = tpu.matmul %17, %18, %cst_16 {dimension_numbers = #tpu.dot_dimension_numbers<[1], [0], [0], [1], [0, 0, 1, 1], [], []>} : vector<2x120xf32>, vector<120x84xf32>, vector<2x84xf32> -> vector<2x84xf32>
      %c0_17 = arith.constant 0 : index
      %c0_18 = arith.constant 0 : index
      %20 = vector.load %arg6[%c0_17, %c0_18] : memref<1x84xf32, #tpu.memory_space<vmem>>, vector<1x84xf32>
      %21 = vector.broadcast %20 : vector<1x84xf32> to vector<2x84xf32>
      %22 = arith.addf %19, %21 : vector<2x84xf32>
      %cst_19 = arith.constant 0.000000e+00 : f32
      %23 = vector.broadcast %cst_19 : f32 to vector<2x84xf32>
      %24 = arith.maximumf %22, %23 : vector<2x84xf32>
      %c0_20 = arith.constant 0 : index
      %c0_21 = arith.constant 0 : index
      %25 = vector.load %arg7[%c0_20, %c0_21] : memref<84x32xf32, #tpu.memory_space<vmem>>, vector<84x32xf32>
      %cst_22 = arith.constant dense<0.000000e+00> : vector<2x32xf32>
      %26 = tpu.matmul %24, %25, %cst_22 {dimension_numbers = #tpu.dot_dimension_numbers<[1], [0], [0], [1], [0, 0, 1, 1], [], []>} : vector<2x84xf32>, vector<84x32xf32>, vector<2x32xf32> -> vector<2x32xf32>
      %c0_23 = arith.constant 0 : index
      %c0_24 = arith.constant 0 : index
      %27 = vector.load %arg8[%c0_23, %c0_24] : memref<1x32xf32, #tpu.memory_space<vmem>>, vector<1x32xf32>
      %28 = vector.broadcast %27 : vector<1x32xf32> to vector<2x32xf32>
      %29 = arith.addf %26, %28 : vector<2x32xf32>
      %cst_25 = arith.constant 0.000000e+00 : f32
      %30 = vector.broadcast %cst_25 : f32 to vector<2x32xf32>
      %31 = arith.maximumf %29, %30 : vector<2x32xf32>
      %c0_26 = arith.constant 0 : index
      %c0_27 = arith.constant 0 : index
      %32 = vector.load %arg9[%c0_26, %c0_27] : memref<32x2xf32, #tpu.memory_space<vmem>>, vector<32x2xf32>
      %cst_28 = arith.constant dense<0.000000e+00> : vector<2x2xf32>
      %33 = tpu.matmul %31, %32, %cst_28 {dimension_numbers = #tpu.dot_dimension_numbers<[1], [0], [0], [1], [0, 0, 1, 1], [], []>} : vector<2x32xf32>, vector<32x2xf32>, vector<2x2xf32> -> vector<2x2xf32>
      %c0_29 = arith.constant 0 : index
      %c0_30 = arith.constant 0 : index
      %34 = vector.load %arg10[%c0_29, %c0_30] : memref<1x2xf32, #tpu.memory_space<vmem>>, vector<1x2xf32>
      %35 = vector.broadcast %34 : vector<1x2xf32> to vector<2x2xf32>
      %36 = arith.addf %33, %35 : vector<2x2xf32>
      %c0_31 = arith.constant 0 : index
      %c0_32 = arith.constant 0 : index
      %37 = vector.load %arg11[%c0_31, %c0_32] : memref<2x2xf32, #tpu.memory_space<vmem>>, vector<2x2xf32>
      tpu.vector_store %arg11[%c0_31, %c0_32], %36 {strides = array<i32>} : memref<2x2xf32, #tpu.memory_space<vmem>>, vector<2x2xf32>,
    } else {
    }
    return
  }
  func.func @transform_0(%arg0: i32, %arg1: i32) -> (i32, i32) {
    %c0_i32 = arith.constant 0 : i32
    return %arg0, %arg1 : i32, i32
  }
  func.func @transform_1(%arg0: i32, %arg1: i32) -> (i32, i32) {
    %c0_i32 = arith.constant 0 : i32
    %c0_i32_0 = arith.constant 0 : i32
    return %arg1, %c0_i32 : i32, i32
  }
  func.func @transform_2(%arg0: i32, %arg1: i32) -> (i32, i32) {
    %c0_i32 = arith.constant 0 : i32
    %c0_i32_0 = arith.constant 0 : i32
    %c0_i32_1 = arith.constant 0 : i32
    return %c0_i32, %c0_i32_0 : i32, i32
  }
  func.func @transform_3(%arg0: i32, %arg1: i32) -> (i32, i32) {
    %c0_i32 = arith.constant 0 : i32
    %c0_i32_0 = arith.constant 0 : i32
    %c0_i32_1 = arith.constant 0 : i32
    return %c0_i32, %c0_i32_0 : i32, i32
  }
  func.func @transform_4(%arg0: i32, %arg1: i32) -> (i32, i32) {
    %c0_i32 = arith.constant 0 : i32
    %c0_i32_0 = arith.constant 0 : i32
    %c0_i32_1 = arith.constant 0 : i32
    return %c0_i32, %c0_i32_0 : i32, i32
  }
  func.func @transform_5(%arg0: i32, %arg1: i32) -> (i32, i32) {
    %c0_i32 = arith.constant 0 : i32
    %c0_i32_0 = arith.constant 0 : i32
    %c0_i32_1 = arith.constant 0 : i32
    return %c0_i32, %c0_i32_0 : i32, i32
  }
  func.func @transform_6(%arg0: i32, %arg1: i32) -> (i32, i32) {
    %c0_i32 = arith.constant 0 : i32
    %c0_i32_0 = arith.constant 0 : i32
    %c0_i32_1 = arith.constant 0 : i32
    return %c0_i32, %c0_i32_0 : i32, i32
  }
  func.func @transform_7(%arg0: i32, %arg1: i32) -> (i32, i32) {
    %c0_i32 = arith.constant 0 : i32
    %c0_i32_0 = arith.constant 0 : i32
    %c0_i32_1 = arith.constant 0 : i32
    return %c0_i32, %c0_i32_0 : i32, i32
  }
  func.func @transform_8(%arg0: i32, %arg1: i32) -> (i32, i32) {
    %c0_i32 = arith.constant 0 : i32
    %c0_i32_0 = arith.constant 0 : i32
    %c0_i32_1 = arith.constant 0 : i32
    return %c0_i32, %c0_i32_0 : i32, i32
  }
  func.func @transform_9(%arg0: i32, %arg1: i32) -> (i32, i32) {
    %c0_i32 = arith.constant 0 : i32
    %c0_i32_0 = arith.constant 0 : i32
    return %arg0, %c0_i32 : i32, i32
  }
}

</mosaic_0001>

<llo_original>
// kernel: tpu_custom_call.1
$region0: #{tpu_custom_call.1}
  #allocation0 [shape = 'u32[]', space=smem, size = 0x4, offset = 0x4, fixed_abs, tag = 'smem constant byte address 0x4 - core index']
  #allocation1 [shape = 'u32[144,128]{1,0:T(1,128)}', space=vmem, size = 0x12000, scoped, tag = 'internal scratch']
  #allocation2 [shape = 'f32[2,120]{1,0:T(2,128)}', space=vmem, size = 0x400, scoped, tag = 'scratch operand']
  %s0 = inlined_call_operand.vmem [shape: bf16[2,12288], index: 0, kind: input, shape index: {}]
  %s1 = inlined_call_operand.vmem [shape: bf16[12288,120], index: 1, kind: input, shape index: {}]
  %s2 = inlined_call_operand.vmem [shape: f32[1,120], index: 2, kind: input, shape index: {}]
  %s3 = inlined_call_operand.vmem [shape: f32[120,84], index: 3, kind: input, shape index: {}]
  %s4 = inlined_call_operand.vmem [shape: f32[1,84], index: 4, kind: input, shape index: {}]
  %s5 = inlined_call_operand.vmem [shape: f32[84,32], index: 5, kind: input, shape index: {}]
  %s6 = inlined_call_operand.vmem [shape: f32[1,32], index: 6, kind: input, shape index: {}]
  %s7 = inlined_call_operand.vmem [shape: f32[32,2], index: 7, kind: input, shape index: {}]
  %s8 = inlined_call_operand.vmem [shape: f32[1,2], index: 8, kind: input, shape index: {}]
  %s9 = inlined_call_operand.hbm [shape: f32[2,2], index: 9, kind: output, shape index: {}]
  %s10 = sld [smem:[#allocation0]]
  $region77: #{tpu_custom_call.1} parent=0
    _
  %s12 = ssub.s32 1, %s10
  %s13 = scalar_select 0, %s12, %s10
  $region1: #{tpu_custom_call.1} parent=0
    #allocation3 [shape = 'u8[1024]{0}', space=vmem, size = 0x400, scoped, tag = 'output window, operand 0, single buffered']
    #allocation4 [shape = 's32[2]{0}', space=sflag, size = 0x8, scoped, tag = 'scoped memory for tpu_custom_call.1']
    %14 = vsyncpa [#allocation4], 0
    loop: start=0, step=1, limit=8
    $region2: #{tpu_custom_call.1} parent=1 // loop_pre_header
      _
    $region3: #{tpu_custom_call.1} parent=1 // loop_header
      %s16 = sphi 0, %s20
      %p17 = scmp.ge.s32.totalorder %s16, 8
      %s23 = sphi 0, %s35
      %s24 = sphi 0, %s31
      %s25 = sphi 0, %s23
      %s26 = sphi 0, %s24
      %s27 = sphi 0, %s25
      %s28 = sphi 0, %s26
      %s40 = sphi 0, %s42
      %s43 = sphi 0, %s40
      %s44 = sphi 0, %s43
      %s60 = sphi 0, %s44
      %s66 = sphi 0, %s68
      %s69 = sphi 0, %s66
      %s70 = sphi 0, %s69
      %s86 = sphi 0, %s70
      %s90 = sphi 0, %s90
      %s92 = sphi 0, %s90
      %s93 = sphi 0, %s92
      %s107 = sphi 0, %s93
      %s111 = sphi 0, %s111
      %s113 = sphi 0, %s111
      %s114 = sphi 0, %s113
      %s128 = sphi 0, %s114
      %s132 = sphi 0, %s132
      %s134 = sphi 0, %s132
      %s135 = sphi 0, %s134
      %s149 = sphi 0, %s135
      %s153 = sphi 0, %s153
      %s155 = sphi 0, %s153
      %s156 = sphi 0, %s155
      %s170 = sphi 0, %s156
      %s174 = sphi 0, %s174
      %s176 = sphi 0, %s174
      %s177 = sphi 0, %s176
      %s191 = sphi 0, %s177
      %s195 = sphi 0, %s195
      %s197 = sphi 0, %s195
      %s198 = sphi 0, %s197
      %s212 = sphi 0, %s198
      %s216 = sphi 0, %s216
      %s218 = sphi 0, %s216
      %s219 = sphi 0, %s218
      %s233 = sphi 0, %s219
      %s239 = sphi 0, %s241
      %s242 = sphi 0, %s239
      %s243 = sphi 0, %s242
      %s259 = sphi 0, %s243
    $region4: #{tpu_custom_call.1} parent=1 // loop_header_branch
      %19 = sbr.rel (%p17) target = $region8
    $region5: #{tpu_custom_call.1} parent=1 // loop_body
      %s21 = ssub.s32 %s16, 1
      %s22 = ssub.s32 %s16, 2
      %s29 = sadd.s32 1, %s24
      %p30 = scmp.ge.s32.totalorder %s29, 6
      %s31 = scalar_select %p30, 0, %s29
      %s32 = sadd.s32 1, %s23
      %s33 = scalar_select %p30, %s32, %s23
      %p34 = scmp.ge.s32.totalorder %s33, 1
      %s35 = scalar_select %p34, 0, %s33
      %s36 = ssub.s32 %s23, %s35
      %s37 = ssub.s32 %s24, %s31
      %s38 = sor.u32 %s36, %s37
      %p39 = scmp.eq.s32.totalorder %s38, 0
      %s41 = sadd.s32 %s40, 1
      %s42 = scalar_select %p39, %s40, %s41
      %p45 = pneg %p39
      %p46 = scmp.eq.s32.totalorder %s16, 5
      %p47 = por %p45, %p46
      %p48 = scmp.ne.s32.totalorder %s40, %s43
      %p49 = scmp.eq.s32.totalorder %s16, 0
      %p50 = por %p48, %p49
      %p51 = scmp.ne.s32.totalorder %s40, %s43
      %p52 = scmp.eq.s32.totalorder %s21, 5
      %p53 = por %p51, %p52
      %p54 = scmp.ne.s32.totalorder %s43, %s44
      %p55 = scmp.eq.s32.totalorder %s21, 0
      %p56 = por %p54, %p55
      %p57 = scmp.ne.s32.totalorder %s43, %s44
      %p58 = scmp.eq.s32.totalorder %s22, 5
      %p59 = por %p57, %p58
      %p61 = scmp.ne.s32.totalorder %s44, %s60
      %p62 = scmp.eq.s32.totalorder %s22, 0
      %p63 = por %p61, %p62
      %s64 = ssub.s32 %s24, %s31
      %p65 = scmp.eq.s32.totalorder %s64, 0
      %s67 = sadd.s32 %s66, 1
      %s68 = scalar_select %p65, %s66, %s67
      %p71 = pneg %p65
      %p72 = scmp.eq.s32.totalorder %s16, 5
      %p73 = por %p71, %p72
      %p74 = scmp.ne.s32.totalorder %s66, %s69
      %p75 = scmp.eq.s32.totalorder %s16, 0
      %p76 = por %p74, %p75
      %p77 = scmp.ne.s32.totalorder %s66, %s69
      %p78 = scmp.eq.s32.totalorder %s21, 5
      %p79 = por %p77, %p78
      %p80 = scmp.ne.s32.totalorder %s69, %s70
      %p81 = scmp.eq.s32.totalorder %s21, 0
      %p82 = por %p80, %p81
      %p83 = scmp.ne.s32.totalorder %s69, %s70
      %p84 = scmp.eq.s32.totalorder %s22, 5
      %p85 = por %p83, %p84
      %p87 = scmp.ne.s32.totalorder %s70, %s86
      %p88 = scmp.eq.s32.totalorder %s22, 0
      %p89 = por %p87, %p88
      %s91 = sadd.s32 %s90, 1
      %p94 = scmp.eq.s32.totalorder %s16, 5
      %p95 = scmp.ne.s32.totalorder %s90, %s92
      %p96 = scmp.eq.s32.totalorder %s16, 0
      %p97 = por %p95, %p96
      %p98 = scmp.ne.s32.totalorder %s90, %s92
      %p99 = scmp.eq.s32.totalorder %s21, 5
      %p100 = por %p98, %p99
      %p101 = scmp.ne.s32.totalorder %s92, %s93
      %p102 = scmp.eq.s32.totalorder %s21, 0
      %p103 = por %p101, %p102
      %p104 = scmp.ne.s32.totalorder %s92, %s93
      %p105 = scmp.eq.s32.totalorder %s22, 5
      %p106 = por %p104, %p105
      %p108 = scmp.ne.s32.totalorder %s93, %s107
      %p109 = scmp.eq.s32.totalorder %s22, 0
      %p110 = por %p108, %p109
      %s112 = sadd.s32 %s111, 1
      %p115 = scmp.eq.s32.totalorder %s16, 5
      %p116 = scmp.ne.s32.totalorder %s111, %s113
      %p117 = scmp.eq.s32.totalorder %s16, 0
      %p118 = por %p116, %p117
      %p119 = scmp.ne.s32.totalorder %s111, %s113
      %p120 = scmp.eq.s32.totalorder %s21, 5
      %p121 = por %p119, %p120
      %p122 = scmp.ne.s32.totalorder %s113, %s114
      %p123 = scmp.eq.s32.totalorder %s21, 0
      %p124 = por %p122, %p123
      %p125 = scmp.ne.s32.totalorder %s113, %s114
      %p126 = scmp.eq.s32.totalorder %s22, 5
      %p127 = por %p125, %p126
      %p129 = scmp.ne.s32.totalorder %s114, %s128
      %p130 = scmp.eq.s32.totalorder %s22, 0
      %p131 = por %p129, %p130
      %s133 = sadd.s32 %s132, 1
      %p136 = scmp.eq.s32.totalorder %s16, 5
      %p137 = scmp.ne.s32.totalorder %s132, %s134
      %p138 = scmp.eq.s32.totalorder %s16, 0
      %p139 = por %p137, %p138
      %p140 = scmp.ne.s32.totalorder %s132, %s134
      %p141 = scmp.eq.s32.totalorder %s21, 5
      %p142 = por %p140, %p141
      %p143 = scmp.ne.s32.totalorder %s134, %s135
      %p144 = scmp.eq.s32.totalorder %s21, 0
      %p145 = por %p143, %p144
      %p146 = scmp.ne.s32.totalorder %s134, %s135
      %p147 = scmp.eq.s32.totalorder %s22, 5
      %p148 = por %p146, %p147
      %p150 = scmp.ne.s32.totalorder %s135, %s149
      %p151 = scmp.eq.s32.totalorder %s22, 0
      %p152 = por %p150, %p151
      %s154 = sadd.s32 %s153, 1
      %p157 = scmp.eq.s32.totalorder %s16, 5
      %p158 = scmp.ne.s32.totalorder %s153, %s155
      %p159 = scmp.eq.s32.totalorder %s16, 0
      %p160 = por %p158, %p159
      %p161 = scmp.ne.s32.totalorder %s153, %s155
      %p162 = scmp.eq.s32.totalorder %s21, 5
      %p163 = por %p161, %p162
      %p164 = scmp.ne.s32.totalorder %s155, %s156
      %p165 = scmp.eq.s32.totalorder %s21, 0
      %p166 = por %p164, %p165
      %p167 = scmp.ne.s32.totalorder %s155, %s156
      %p168 = scmp.eq.s32.totalorder %s22, 5
      %p169 = por %p167, %p168
      %p171 = scmp.ne.s32.totalorder %s156, %s170
      %p172 = scmp.eq.s32.totalorder %s22, 0
      %p173 = por %p171, %p172
      %s175 = sadd.s32 %s174, 1
      %p178 = scmp.eq.s32.totalorder %s16, 5
      %p179 = scmp.ne.s32.totalorder %s174, %s176
      %p180 = scmp.eq.s32.totalorder %s16, 0
      %p181 = por %p179, %p180
      %p182 = scmp.ne.s32.totalorder %s174, %s176
      %p183 = scmp.eq.s32.totalorder %s21, 5
      %p184 = por %p182, %p183
      %p185 = scmp.ne.s32.totalorder %s176, %s177
      %p186 = scmp.eq.s32.totalorder %s21, 0
      %p187 = por %p185, %p186
      %p188 = scmp.ne.s32.totalorder %s176, %s177
      %p189 = scmp.eq.s32.totalorder %s22, 5
      %p190 = por %p188, %p189
      %p192 = scmp.ne.s32.totalorder %s177, %s191
      %p193 = scmp.eq.s32.totalorder %s22, 0
      %p194 = por %p192, %p193
      %s196 = sadd.s32 %s195, 1
      %p199 = scmp.eq.s32.totalorder %s16, 5
      %p200 = scmp.ne.s32.totalorder %s195, %s197
      %p201 = scmp.eq.s32.totalorder %s16, 0
      %p202 = por %p200, %p201
      %p203 = scmp.ne.s32.totalorder %s195, %s197
      %p204 = scmp.eq.s32.totalorder %s21, 5
      %p205 = por %p203, %p204
      %p206 = scmp.ne.s32.totalorder %s197, %s198
      %p207 = scmp.eq.s32.totalorder %s21, 0
      %p208 = por %p206, %p207
      %p209 = scmp.ne.s32.totalorder %s197, %s198
      %p210 = scmp.eq.s32.totalorder %s22, 5
      %p211 = por %p209, %p210
      %p213 = scmp.ne.s32.totalorder %s198, %s212
      %p214 = scmp.eq.s32.totalorder %s22, 0
      %p215 = por %p213, %p214
      %s217 = sadd.s32 %s216, 1
      %p220 = scmp.eq.s32.totalorder %s16, 5
      %p221 = scmp.ne.s32.totalorder %s216, %s218
      %p222 = scmp.eq.s32.totalorder %s16, 0
      %p223 = por %p221, %p222
      %p224 = scmp.ne.s32.totalorder %s216, %s218
      %p225 = scmp.eq.s32.totalorder %s21, 5
      %p226 = por %p224, %p225
      %p227 = scmp.ne.s32.totalorder %s218, %s219
      %p228 = scmp.eq.s32.totalorder %s21, 0
      %p229 = por %p227, %p228
      %p230 = scmp.ne.s32.totalorder %s218, %s219
      %p231 = scmp.eq.s32.totalorder %s22, 5
      %p232 = por %p230, %p231
      %p234 = scmp.ne.s32.totalorder %s219, %s233
      %p235 = scmp.eq.s32.totalorder %s22, 0
      %p236 = por %p234, %p235
      %s237 = ssub.s32 %s23, %s35
      %p238 = scmp.eq.s32.totalorder %s237, 0
      %s240 = sadd.s32 %s239, 1
      %s241 = scalar_select %p238, %s239, %s240
      %p244 = pneg %p238
      %p245 = scmp.eq.s32.totalorder %s16, 5
      %p246 = por %p244, %p245
      %p247 = scmp.ne.s32.totalorder %s239, %s242
      %p248 = scmp.eq.s32.totalorder %s16, 0
      %p249 = por %p247, %p248
      %p250 = scmp.ne.s32.totalorder %s239, %s242
      %p251 = scmp.eq.s32.totalorder %s21, 5
      %p252 = por %p250, %p251
      %p253 = scmp.ne.s32.totalorder %s242, %s243
      %p254 = scmp.eq.s32.totalorder %s21, 0
      %p255 = por %p253, %p254
      %p256 = scmp.ne.s32.totalorder %s242, %s243
      %p257 = scmp.eq.s32.totalorder %s22, 5
      %p258 = por %p256, %p257
      %p260 = scmp.ne.s32.totalorder %s243, %s259
      %p261 = scmp.eq.s32.totalorder %s22, 0
      %p262 = por %p260, %p261
      %p263 = scmp.le.s32.totalorder 1, %s16
      %p264 = scmp.lt.s32.totalorder %s16, 7
      %p265 = pnand %p263, %p264
      %p266 = pneg %p265
      // Predicated region
      $region9: #{tpu_custom_call.1} parent=5 // pred_check
        _
      $region10: #{tpu_custom_call.1} parent=5 // pred_check_branch
        %268 = sbr.rel (%p265) target = $region12
      $region11: #{tpu_custom_call.1} parent=5 // pred_region
        %s269 = ssub.s32 %s16, 1
        // Predicated region
        $region13: #{tpu_custom_call.1} parent=11 // pred_check
          %p270 = pneg %p103
        $region14: #{tpu_custom_call.1} parent=11 // pred_check_branch
          %272 = sbr.rel (%p270) target = $region16
        $region15: #{tpu_custom_call.1} parent=11 // pred_region
          _
        $region16: #{tpu_custom_call.1} parent=11 // pred_fallthru
          _
        // Predicated region
        $region17: #{tpu_custom_call.1} parent=11 // pred_check
          %p273 = pneg %p124
        $region18: #{tpu_custom_call.1} parent=11 // pred_check_branch
          %275 = sbr.rel (%p273) target = $region20
        $region19: #{tpu_custom_call.1} parent=11 // pred_region
          _
        $region20: #{tpu_custom_call.1} parent=11 // pred_fallthru
          _
        // Predicated region
        $region21: #{tpu_custom_call.1} parent=11 // pred_check
          %p276 = pneg %p145
        $region22: #{tpu_custom_call.1} parent=11 // pred_check_branch
          %278 = sbr.rel (%p276) target = $region24
        $region23: #{tpu_custom_call.1} parent=11 // pred_region
          _
        $region24: #{tpu_custom_call.1} parent=11 // pred_fallthru
          _
        // Predicated region
        $region25: #{tpu_custom_call.1} parent=11 // pred_check
          %p279 = pneg %p166
        $region26: #{tpu_custom_call.1} parent=11 // pred_check_branch
          %281 = sbr.rel (%p279) target = $region28
        $region27: #{tpu_custom_call.1} parent=11 // pred_region
          _
        $region28: #{tpu_custom_call.1} parent=11 // pred_fallthru
          _
        // Predicated region
        $region29: #{tpu_custom_call.1} parent=11 // pred_check
          %p282 = pneg %p187
        $region30: #{tpu_custom_call.1} parent=11 // pred_check_branch
          %284 = sbr.rel (%p282) target = $region32
        $region31: #{tpu_custom_call.1} parent=11 // pred_region
          _
        $region32: #{tpu_custom_call.1} parent=11 // pred_fallthru
          _
        // Predicated region
        $region33: #{tpu_custom_call.1} parent=11 // pred_check
          %p285 = pneg %p208
        $region34: #{tpu_custom_call.1} parent=11 // pred_check_branch
          %287 = sbr.rel (%p285) target = $region36
        $region35: #{tpu_custom_call.1} parent=11 // pred_region
          _
        $region36: #{tpu_custom_call.1} parent=11 // pred_fallthru
          _
        // Predicated region
        $region37: #{tpu_custom_call.1} parent=11 // pred_check
          %p288 = pneg %p229
        $region38: #{tpu_custom_call.1} parent=11 // pred_check_branch
          %290 = sbr.rel (%p288) target = $region40
        $region39: #{tpu_custom_call.1} parent=11 // pred_region
          _
        $region40: #{tpu_custom_call.1} parent=11 // pred_fallthru
          _
      $region12: #{tpu_custom_call.1} parent=5 // pred_fallthru
        _
      %p291 = scmp.lt.s32.totalorder %s16, 6
      // Predicated region
      $region41: #{tpu_custom_call.1} parent=5 // pred_check
        %p292 = pneg %p291
      $region42: #{tpu_custom_call.1} parent=5 // pred_check_branch
        %294 = sbr.rel (%p292) target = $region44
      $region43: #{tpu_custom_call.1} parent=5 // pred_region
        // Predicated region
        $region45: #{tpu_custom_call.1} parent=43 // pred_check
          %p295 = pneg %p50
        $region46: #{tpu_custom_call.1} parent=43 // pred_check_branch
          %297 = sbr.rel (%p295) target = $region48
        $region47: #{tpu_custom_call.1} parent=43 // pred_region
          %s298 = smul.u32 16, %s24
          %p299 = scmp.lt.s32.totalorder %s23, 0
          %s300 = scalar_select %p299, %s23, 0
          %p301 = scmp.lt.s32.totalorder %s298, 95
          %s302 = scalar_select %p301, %s298, 95
          %s303 = smul.addr %s300, 96
          %s304 = sadd.s32 %s302, %s303
          %s305 = scalar_lea.vmem %s0, %s304
          %s306 = smul.u32 16, %s24
        $region48: #{tpu_custom_call.1} parent=43 // pred_fallthru
          _
        // Predicated region
        $region49: #{tpu_custom_call.1} parent=43 // pred_check
          %p307 = pneg %p76
        $region50: #{tpu_custom_call.1} parent=43 // pred_check_branch
          %309 = sbr.rel (%p307) target = $region52
        $region51: #{tpu_custom_call.1} parent=43 // pred_region
          %s310 = smul.u32 256, %s24
          %p311 = scmp.lt.s32.totalorder %s310, 1535
          %s312 = scalar_select %p311, %s310, 1535
          %s313 = smul.addr %s312, 4
          %s314 = scalar_lea.vmem %s1, %s313
          %s315 = smul.u32 256, %s24
        $region52: #{tpu_custom_call.1} parent=43 // pred_fallthru
          _
      $region44: #{tpu_custom_call.1} parent=5 // pred_fallthru
        _
      %p316 = scmp.le.s32.totalorder 1, %s16
      %p317 = scmp.lt.s32.totalorder %s16, 7
      %p318 = pnand %p316, %p317
      %p319 = pneg %p318
      // Predicated region
      $region53: #{tpu_custom_call.1} parent=5 // pred_check
        _
      $region54: #{tpu_custom_call.1} parent=5 // pred_check_branch
        %321 = sbr.rel (%p318) target = $region56
      $region55: #{tpu_custom_call.1} parent=5 // pred_region
        %s322 = ssub.s32 %s16, 1
        %s323 = smul.u32 16, %s26
        %p324 = scmp.lt.s32.totalorder %s25, 0
        %s325 = scalar_select %p324, %s25, 0
        %p326 = scmp.lt.s32.totalorder %s323, 95
        %s327 = scalar_select %p326, %s323, 95
        %s328 = smul.addr %s325, 96
        %s329 = sadd.s32 %s327, %s328
        %s330 = scalar_lea.vmem %s0, %s329
        %p331 = pneg %p56
        %p332 = pneg %p53
        %s333 = smul.u32 256, %s26
        %p334 = scmp.lt.s32.totalorder %s333, 1535
        %s335 = scalar_select %p334, %s333, 1535
        %s336 = smul.addr %s335, 4
        %s337 = scalar_lea.vmem %s1, %s336
        %p338 = pneg %p82
        %p339 = pneg %p79
        %p340 = pneg %p103
        %p341 = pneg %p100
        %p342 = pneg %p124
        %p343 = pneg %p121
        %p344 = pneg %p145
        %p345 = pneg %p142
        %p346 = pneg %p166
        %p347 = pneg %p163
        %p348 = pneg %p187
        %p349 = pneg %p184
        %p350 = pneg %p208
        %p351 = pneg %p205
        %p352 = pneg %p229
        %p353 = pneg %p226
        %p354 = pneg %p255
        %p355 = pneg %p252
        %s356 = smul.u32 16, %s26
        %p357 = scmp.lt.s32.totalorder %s25, 0
        %s358 = scalar_select %p357, %s25, 0
        %p359 = scmp.lt.s32.totalorder %s356, 95
        %s360 = scalar_select %p359, %s356, 95
        %s361 = smul.addr %s358, 96
        %s362 = sadd.s32 %s360, %s361
        %s363 = scalar_lea.vmem %s0, %s362
        %s364 = smul.u32 16, %s26
        %s365 = smul.u32 256, %s26
        %p366 = scmp.lt.s32.totalorder %s365, 1535
        %s367 = scalar_select %p366, %s365, 1535
        %s368 = smul.addr %s367, 4
        %s369 = scalar_lea.vmem %s1, %s368
        %s370 = smul.u32 256, %s26
        %p372 = scmp.eq.s32.totalorder %s26, 0
        // Predicated region
        $region57: #{tpu_custom_call.1} parent=55 // pred_check
          %p373 = pneg %p372
        $region58: #{tpu_custom_call.1} parent=55 // pred_check_branch
          %375 = sbr.rel (%p373) target = $region60
        $region59: #{tpu_custom_call.1} parent=55 // pred_region
          %vm376 = vcmask 975872
          %377 = vst.msk [vmem:[#allocation2] sm:$0x3] %vm376, 0.0
        $region60: #{tpu_custom_call.1} parent=55 // pred_fallthru
          _
        %v378 = vld [vmem:[#allocation2] sm:$0x3]
        %v379 = vld [vmem:[%s363] sm:$0xff]
        %v380 = vld [vmem:[%s363 + $0x8] sm:$0xff]
        %v381 = vld [vmem:[%s369] sm:$0xf]
        %v382 = vld [vmem:[%s369 + $0x4] sm:$0xf]
        %v383 = vld [vmem:[%s369 + $0x8] sm:$0xf]
        %v384 = vld [vmem:[%s369 + $0xc] sm:$0xf]
        %v385 = vld [vmem:[%s369 + $0x10] sm:$0xf]
        %v386 = vld [vmem:[%s369 + $0x14] sm:$0xf]
        %v387 = vld [vmem:[%s369 + $0x18] sm:$0xf]
        %v388 = vld [vmem:[%s369 + $0x1c] sm:$0xf]
        %v389 = vld [vmem:[%s369 + $0x20] sm:$0xf]
        %v390 = vld [vmem:[%s369 + $0x24] sm:$0xf]
        %v391 = vld [vmem:[%s369 + $0x28] sm:$0xf]
        %v392 = vld [vmem:[%s369 + $0x2c] sm:$0xf]
        %v393 = vld [vmem:[%s369 + $0x30] sm:$0xf]
        %v394 = vld [vmem:[%s369 + $0x34] sm:$0xf]
        %v395 = vld [vmem:[%s369 + $0x38] sm:$0xf]
        %v396 = vld [vmem:[%s369 + $0x3c] sm:$0xf]
        %v397 = vld [vmem:[%s369 + $0x40] sm:$0xf]
        %v398 = vld [vmem:[%s369 + $0x44] sm:$0xf]
        %v399 = vld [vmem:[%s369 + $0x48] sm:$0xf]
        %v400 = vld [vmem:[%s369 + $0x4c] sm:$0xf]
        %v401 = vld [vmem:[%s369 + $0x50] sm:$0xf]
        %v402 = vld [vmem:[%s369 + $0x54] sm:$0xf]
        %v403 = vld [vmem:[%s369 + $0x58] sm:$0xf]
        %v404 = vld [vmem:[%s369 + $0x5c] sm:$0xf]
        %v405 = vld [vmem:[%s369 + $0x60] sm:$0xf]
        %v406 = vld [vmem:[%s369 + $0x64] sm:$0xf]
        %v407 = vld [vmem:[%s369 + $0x68] sm:$0xf]
        %v408 = vld [vmem:[%s369 + $0x6c] sm:$0xf]
        %v409 = vld [vmem:[%s369 + $0x70] sm:$0xf]
        %v410 = vld [vmem:[%s369 + $0x74] sm:$0xf]
        %v411 = vld [vmem:[%s369 + $0x78] sm:$0xf]
        %v412 = vld [vmem:[%s369 + $0x7c] sm:$0xf]
        %v413 = vld [vmem:[%s369 + $0x80] sm:$0xf]
        %v414 = vld [vmem:[%s369 + $0x84] sm:$0xf]
        %v415 = vld [vmem:[%s369 + $0x88] sm:$0xf]
        %v416 = vld [vmem:[%s369 + $0x8c] sm:$0xf]
        %v417 = vld [vmem:[%s369 + $0x90] sm:$0xf]
        %v418 = vld [vmem:[%s369 + $0x94] sm:$0xf]
        %v419 = vld [vmem:[%s369 + $0x98] sm:$0xf]
        %v420 = vld [vmem:[%s369 + $0x9c] sm:$0xf]
        %v421 = vld [vmem:[%s369 + $0xa0] sm:$0xf]
        %v422 = vld [vmem:[%s369 + $0xa4] sm:$0xf]
        %v423 = vld [vmem:[%s369 + $0xa8] sm:$0xf]
        %v424 = vld [vmem:[%s369 + $0xac] sm:$0xf]
        %v425 = vld [vmem:[%s369 + $0xb0] sm:$0xf]
        %v426 = vld [vmem:[%s369 + $0xb4] sm:$0xf]
        %v427 = vld [vmem:[%s369 + $0xb8] sm:$0xf]
        %v428 = vld [vmem:[%s369 + $0xbc] sm:$0xf]
        %v429 = vld [vmem:[%s369 + $0xc0] sm:$0xf]
        %v430 = vld [vmem:[%s369 + $0xc4] sm:$0xf]
        %v431 = vld [vmem:[%s369 + $0xc8] sm:$0xf]
        %v432 = vld [vmem:[%s369 + $0xcc] sm:$0xf]
        %v433 = vld [vmem:[%s369 + $0xd0] sm:$0xf]
        %v434 = vld [vmem:[%s369 + $0xd4] sm:$0xf]
        %v435 = vld [vmem:[%s369 + $0xd8] sm:$0xf]
        %v436 = vld [vmem:[%s369 + $0xdc] sm:$0xf]
        %v437 = vld [vmem:[%s369 + $0xe0] sm:$0xf]
        %v438 = vld [vmem:[%s369 + $0xe4] sm:$0xf]
        %v439 = vld [vmem:[%s369 + $0xe8] sm:$0xf]
        %v440 = vld [vmem:[%s369 + $0xec] sm:$0xf]
        %v441 = vld [vmem:[%s369 + $0xf0] sm:$0xf]
        %v442 = vld [vmem:[%s369 + $0xf4] sm:$0xf]
        %v443 = vld [vmem:[%s369 + $0xf8] sm:$0xf]
        %v444 = vld [vmem:[%s369 + $0xfc] sm:$0xf]
        %v445 = vld [vmem:[%s369 + $0x100] sm:$0xf]
        %v446 = vld [vmem:[%s369 + $0x104] sm:$0xf]
        %v447 = vld [vmem:[%s369 + $0x108] sm:$0xf]
        %v448 = vld [vmem:[%s369 + $0x10c] sm:$0xf]
        %v449 = vld [vmem:[%s369 + $0x110] sm:$0xf]
        %v450 = vld [vmem:[%s369 + $0x114] sm:$0xf]
        %v451 = vld [vmem:[%s369 + $0x118] sm:$0xf]
        %v452 = vld [vmem:[%s369 + $0x11c] sm:$0xf]
        %v453 = vld [vmem:[%s369 + $0x120] sm:$0xf]
        %v454 = vld [vmem:[%s369 + $0x124] sm:$0xf]
        %v455 = vld [vmem:[%s369 + $0x128] sm:$0xf]
        %v456 = vld [vmem:[%s369 + $0x12c] sm:$0xf]
        %v457 = vld [vmem:[%s369 + $0x130] sm:$0xf]
        %v458 = vld [vmem:[%s369 + $0x134] sm:$0xf]
        %v459 = vld [vmem:[%s369 + $0x138] sm:$0xf]
        %v460 = vld [vmem:[%s369 + $0x13c] sm:$0xf]
        %v461 = vld [vmem:[%s369 + $0x140] sm:$0xf]
        %v462 = vld [vmem:[%s369 + $0x144] sm:$0xf]
        %v463 = vld [vmem:[%s369 + $0x148] sm:$0xf]
        %v464 = vld [vmem:[%s369 + $0x14c] sm:$0xf]
        %v465 = vld [vmem:[%s369 + $0x150] sm:$0xf]
        %v466 = vld [vmem:[%s369 + $0x154] sm:$0xf]
        %v467 = vld [vmem:[%s369 + $0x158] sm:$0xf]
        %v468 = vld [vmem:[%s369 + $0x15c] sm:$0xf]
        %v469 = vld [vmem:[%s369 + $0x160] sm:$0xf]
        %v470 = vld [vmem:[%s369 + $0x164] sm:$0xf]
        %v471 = vld [vmem:[%s369 + $0x168] sm:$0xf]
        %v472 = vld [vmem:[%s369 + $0x16c] sm:$0xf]
        %v473 = vld [vmem:[%s369 + $0x170] sm:$0xf]
        %v474 = vld [vmem:[%s369 + $0x174] sm:$0xf]
        %v475 = vld [vmem:[%s369 + $0x178] sm:$0xf]
        %v476 = vld [vmem:[%s369 + $0x17c] sm:$0xf]
        %v477 = vld [vmem:[%s369 + $0x180] sm:$0xf]
        %v478 = vld [vmem:[%s369 + $0x184] sm:$0xf]
        %v479 = vld [vmem:[%s369 + $0x188] sm:$0xf]
        %v480 = vld [vmem:[%s369 + $0x18c] sm:$0xf]
        %v481 = vld [vmem:[%s369 + $0x190] sm:$0xf]
        %v482 = vld [vmem:[%s369 + $0x194] sm:$0xf]
        %v483 = vld [vmem:[%s369 + $0x198] sm:$0xf]
        %v484 = vld [vmem:[%s369 + $0x19c] sm:$0xf]
        %v485 = vld [vmem:[%s369 + $0x1a0] sm:$0xf]
        %v486 = vld [vmem:[%s369 + $0x1a4] sm:$0xf]
        %v487 = vld [vmem:[%s369 + $0x1a8] sm:$0xf]
        %v488 = vld [vmem:[%s369 + $0x1ac] sm:$0xf]
        %v489 = vld [vmem:[%s369 + $0x1b0] sm:$0xf]
        %v490 = vld [vmem:[%s369 + $0x1b4] sm:$0xf]
        %v491 = vld [vmem:[%s369 + $0x1b8] sm:$0xf]
        %v492 = vld [vmem:[%s369 + $0x1bc] sm:$0xf]
        %v493 = vld [vmem:[%s369 + $0x1c0] sm:$0xf]
        %v494 = vld [vmem:[%s369 + $0x1c4] sm:$0xf]
        %v495 = vld [vmem:[%s369 + $0x1c8] sm:$0xf]
        %v496 = vld [vmem:[%s369 + $0x1cc] sm:$0xf]
        %v497 = vld [vmem:[%s369 + $0x1d0] sm:$0xf]
        %v498 = vld [vmem:[%s369 + $0x1d4] sm:$0xf]
        %v499 = vld [vmem:[%s369 + $0x1d8] sm:$0xf]
        %v500 = vld [vmem:[%s369 + $0x1dc] sm:$0xf]
        %v501 = vld [vmem:[%s369 + $0x1e0] sm:$0xf]
        %v502 = vld [vmem:[%s369 + $0x1e4] sm:$0xf]
        %v503 = vld [vmem:[%s369 + $0x1e8] sm:$0xf]
        %v504 = vld [vmem:[%s369 + $0x1ec] sm:$0xf]
        %v505 = vld [vmem:[%s369 + $0x1f0] sm:$0xf]
        %v506 = vld [vmem:[%s369 + $0x1f4] sm:$0xf]
        %v507 = vld [vmem:[%s369 + $0x1f8] sm:$0xf]
        %v508 = vld [vmem:[%s369 + $0x1fc] sm:$0xf]
        %v509 = vld [vmem:[%s369 + $0x200] sm:$0xf]
        %v510 = vld [vmem:[%s369 + $0x204] sm:$0xf]
        %v511 = vld [vmem:[%s369 + $0x208] sm:$0xf]
        %v512 = vld [vmem:[%s369 + $0x20c] sm:$0xf]
        %v513 = vld [vmem:[%s369 + $0x210] sm:$0xf]
        %v514 = vld [vmem:[%s369 + $0x214] sm:$0xf]
        %v515 = vld [vmem:[%s369 + $0x218] sm:$0xf]
        %v516 = vld [vmem:[%s369 + $0x21c] sm:$0xf]
        %v517 = vld [vmem:[%s369 + $0x220] sm:$0xf]
        %v518 = vld [vmem:[%s369 + $0x224] sm:$0xf]
        %v519 = vld [vmem:[%s369 + $0x228] sm:$0xf]
        %v520 = vld [vmem:[%s369 + $0x22c] sm:$0xf]
        %v521 = vld [vmem:[%s369 + $0x230] sm:$0xf]
        %v522 = vld [vmem:[%s369 + $0x234] sm:$0xf]
        %v523 = vld [vmem:[%s369 + $0x238] sm:$0xf]
        %v524 = vld [vmem:[%s369 + $0x23c] sm:$0xf]
        %v525 = vld [vmem:[%s369 + $0x240] sm:$0xf]
        %v526 = vld [vmem:[%s369 + $0x244] sm:$0xf]
        %v527 = vld [vmem:[%s369 + $0x248] sm:$0xf]
        %v528 = vld [vmem:[%s369 + $0x24c] sm:$0xf]
        %v529 = vld [vmem:[%s369 + $0x250] sm:$0xf]
        %v530 = vld [vmem:[%s369 + $0x254] sm:$0xf]
        %v531 = vld [vmem:[%s369 + $0x258] sm:$0xf]
        %v532 = vld [vmem:[%s369 + $0x25c] sm:$0xf]
        %v533 = vld [vmem:[%s369 + $0x260] sm:$0xf]
        %v534 = vld [vmem:[%s369 + $0x264] sm:$0xf]
        %v535 = vld [vmem:[%s369 + $0x268] sm:$0xf]
        %v536 = vld [vmem:[%s369 + $0x26c] sm:$0xf]
        %v537 = vld [vmem:[%s369 + $0x270] sm:$0xf]
        %v538 = vld [vmem:[%s369 + $0x274] sm:$0xf]
        %v539 = vld [vmem:[%s369 + $0x278] sm:$0xf]
        %v540 = vld [vmem:[%s369 + $0x27c] sm:$0xf]
        %v541 = vld [vmem:[%s369 + $0x280] sm:$0xf]
        %v542 = vld [vmem:[%s369 + $0x284] sm:$0xf]
        %v543 = vld [vmem:[%s369 + $0x288] sm:$0xf]
        %v544 = vld [vmem:[%s369 + $0x28c] sm:$0xf]
        %v545 = vld [vmem:[%s369 + $0x290] sm:$0xf]
        %v546 = vld [vmem:[%s369 + $0x294] sm:$0xf]
        %v547 = vld [vmem:[%s369 + $0x298] sm:$0xf]
        %v548 = vld [vmem:[%s369 + $0x29c] sm:$0xf]
        %v549 = vld [vmem:[%s369 + $0x2a0] sm:$0xf]
        %v550 = vld [vmem:[%s369 + $0x2a4] sm:$0xf]
        %v551 = vld [vmem:[%s369 + $0x2a8] sm:$0xf]
        %v552 = vld [vmem:[%s369 + $0x2ac] sm:$0xf]
        %v553 = vld [vmem:[%s369 + $0x2b0] sm:$0xf]
        %v554 = vld [vmem:[%s369 + $0x2b4] sm:$0xf]
        %v555 = vld [vmem:[%s369 + $0x2b8] sm:$0xf]
        %v556 = vld [vmem:[%s369 + $0x2bc] sm:$0xf]
        %v557 = vld [vmem:[%s369 + $0x2c0] sm:$0xf]
        %v558 = vld [vmem:[%s369 + $0x2c4] sm:$0xf]
        %v559 = vld [vmem:[%s369 + $0x2c8] sm:$0xf]
        %v560 = vld [vmem:[%s369 + $0x2cc] sm:$0xf]
        %v561 = vld [vmem:[%s369 + $0x2d0] sm:$0xf]
        %v562 = vld [vmem:[%s369 + $0x2d4] sm:$0xf]
        %v563 = vld [vmem:[%s369 + $0x2d8] sm:$0xf]
        %v564 = vld [vmem:[%s369 + $0x2dc] sm:$0xf]
        %v565 = vld [vmem:[%s369 + $0x2e0] sm:$0xf]
        %v566 = vld [vmem:[%s369 + $0x2e4] sm:$0xf]
        %v567 = vld [vmem:[%s369 + $0x2e8] sm:$0xf]
        %v568 = vld [vmem:[%s369 + $0x2ec] sm:$0xf]
        %v569 = vld [vmem:[%s369 + $0x2f0] sm:$0xf]
        %v570 = vld [vmem:[%s369 + $0x2f4] sm:$0xf]
        %v571 = vld [vmem:[%s369 + $0x2f8] sm:$0xf]
        %v572 = vld [vmem:[%s369 + $0x2fc] sm:$0xf]
        %v573 = vld [vmem:[%s369 + $0x300] sm:$0xf]
        %v574 = vld [vmem:[%s369 + $0x304] sm:$0xf]
        %v575 = vld [vmem:[%s369 + $0x308] sm:$0xf]
        %v576 = vld [vmem:[%s369 + $0x30c] sm:$0xf]
        %v577 = vld [vmem:[%s369 + $0x310] sm:$0xf]
        %v578 = vld [vmem:[%s369 + $0x314] sm:$0xf]
        %v579 = vld [vmem:[%s369 + $0x318] sm:$0xf]
        %v580 = vld [vmem:[%s369 + $0x31c] sm:$0xf]
        %v581 = vld [vmem:[%s369 + $0x320] sm:$0xf]
        %v582 = vld [vmem:[%s369 + $0x324] sm:$0xf]
        %v583 = vld [vmem:[%s369 + $0x328] sm:$0xf]
        %v584 = vld [vmem:[%s369 + $0x32c] sm:$0xf]
        %v585 = vld [vmem:[%s369 + $0x330] sm:$0xf]
        %v586 = vld [vmem:[%s369 + $0x334] sm:$0xf]
        %v587 = vld [vmem:[%s369 + $0x338] sm:$0xf]
        %v588 = vld [vmem:[%s369 + $0x33c] sm:$0xf]
        %v589 = vld [vmem:[%s369 + $0x340] sm:$0xf]
        %v590 = vld [vmem:[%s369 + $0x344] sm:$0xf]
        %v591 = vld [vmem:[%s369 + $0x348] sm:$0xf]
        %v592 = vld [vmem:[%s369 + $0x34c] sm:$0xf]
        %v593 = vld [vmem:[%s369 + $0x350] sm:$0xf]
        %v594 = vld [vmem:[%s369 + $0x354] sm:$0xf]
        %v595 = vld [vmem:[%s369 + $0x358] sm:$0xf]
        %v596 = vld [vmem:[%s369 + $0x35c] sm:$0xf]
        %v597 = vld [vmem:[%s369 + $0x360] sm:$0xf]
        %v598 = vld [vmem:[%s369 + $0x364] sm:$0xf]
        %v599 = vld [vmem:[%s369 + $0x368] sm:$0xf]
        %v600 = vld [vmem:[%s369 + $0x36c] sm:$0xf]
        %v601 = vld [vmem:[%s369 + $0x370] sm:$0xf]
        %v602 = vld [vmem:[%s369 + $0x374] sm:$0xf]
        %v603 = vld [vmem:[%s369 + $0x378] sm:$0xf]
        %v604 = vld [vmem:[%s369 + $0x37c] sm:$0xf]
        %v605 = vld [vmem:[%s369 + $0x380] sm:$0xf]
        %v606 = vld [vmem:[%s369 + $0x384] sm:$0xf]
        %v607 = vld [vmem:[%s369 + $0x388] sm:$0xf]
        %v608 = vld [vmem:[%s369 + $0x38c] sm:$0xf]
        %v609 = vld [vmem:[%s369 + $0x390] sm:$0xf]
        %v610 = vld [vmem:[%s369 + $0x394] sm:$0xf]
        %v611 = vld [vmem:[%s369 + $0x398] sm:$0xf]
        %v612 = vld [vmem:[%s369 + $0x39c] sm:$0xf]
        %v613 = vld [vmem:[%s369 + $0x3a0] sm:$0xf]
        %v614 = vld [vmem:[%s369 + $0x3a4] sm:$0xf]
        %v615 = vld [vmem:[%s369 + $0x3a8] sm:$0xf]
        %v616 = vld [vmem:[%s369 + $0x3ac] sm:$0xf]
        %v617 = vld [vmem:[%s369 + $0x3b0] sm:$0xf]
        %v618 = vld [vmem:[%s369 + $0x3b4] sm:$0xf]
        %v619 = vld [vmem:[%s369 + $0x3b8] sm:$0xf]
        %v620 = vld [vmem:[%s369 + $0x3bc] sm:$0xf]
        %v621 = vld [vmem:[%s369 + $0x3c0] sm:$0xf]
        %v622 = vld [vmem:[%s369 + $0x3c4] sm:$0xf]
        %v623 = vld [vmem:[%s369 + $0x3c8] sm:$0xf]
        %v624 = vld [vmem:[%s369 + $0x3cc] sm:$0xf]
        %v625 = vld [vmem:[%s369 + $0x3d0] sm:$0xf]
        %v626 = vld [vmem:[%s369 + $0x3d4] sm:$0xf]
        %v627 = vld [vmem:[%s369 + $0x3d8] sm:$0xf]
        %v628 = vld [vmem:[%s369 + $0x3dc] sm:$0xf]
        %v629 = vld [vmem:[%s369 + $0x3e0] sm:$0xf]
        %v630 = vld [vmem:[%s369 + $0x3e4] sm:$0xf]
        %v631 = vld [vmem:[%s369 + $0x3e8] sm:$0xf]
        %v632 = vld [vmem:[%s369 + $0x3ec] sm:$0xf]
        %v633 = vld [vmem:[%s369 + $0x3f0] sm:$0xf]
        %v634 = vld [vmem:[%s369 + $0x3f4] sm:$0xf]
        %v635 = vld [vmem:[%s369 + $0x3f8] sm:$0xf]
        %v636 = vld [vmem:[%s369 + $0x3fc] sm:$0xf]
        %v639 = vcombine.high %v379, %v379
        %v641 = vunpack.c.l.s4 1966171168
        %v642 = vunpack.c.0.s8 %v641
        %v643 = vlaneseq
        %v644 = vshrl.u32 %v643, 7
        %v645 = vsub.s32 %v642, %v644
        %v646 = vrot.slane %v379, %v645
        %v648 = vunpack.c.l.s4 1966171168
        %v649 = vunpack.c.0.s8 %v648
        %v650 = vlaneseq
        %v651 = vshrl.u32 %v650, 7
        %v652 = vsub.s32 %v649, %v651
        %v653 = vrot.slane %v639, %v652
        %v654 = vcombine.high %v646, %v646
        %v655 = vcombine.high %v653, %v653
        %v657 = vunpack.c.l.s4 1966171168
        %v658 = vunpack.c.0.s8 %v657
        %v659 = vlaneseq
        %v660 = vshrl.u32 %v659, 7
        %v661 = vsub.s32 %v658, %v660
        %v662 = vrot.slane %v646, %v661
        %v664 = vunpack.c.l.s4 1966171168
        %v665 = vunpack.c.0.s8 %v664
        %v666 = vlaneseq
        %v667 = vshrl.u32 %v666, 7
        %v668 = vsub.s32 %v665, %v667
        %v669 = vrot.slane %v653, %v668
        %v671 = vunpack.c.l.s4 1966171168
        %v672 = vunpack.c.0.s8 %v671
        %v673 = vlaneseq
        %v674 = vshrl.u32 %v673, 7
        %v675 = vsub.s32 %v672, %v674
        %v676 = vrot.slane %v654, %v675
        %v678 = vunpack.c.l.s4 1966171168
        %v679 = vunpack.c.0.s8 %v678
        %v680 = vlaneseq
        %v681 = vshrl.u32 %v680, 7
        %v682 = vsub.s32 %v679, %v681
        %v683 = vrot.slane %v655, %v682
        %v684 = vcombine.high %v662, %v662
        %v685 = vcombine.high %v669, %v669
        %v686 = vcombine.high %v676, %v676
        %v687 = vcombine.high %v683, %v683
        %v688 = vcombine.high %v380, %v380
        %v690 = vunpack.c.l.s4 1966171168
        %v691 = vunpack.c.0.s8 %v690
        %v692 = vlaneseq
        %v693 = vshrl.u32 %v692, 7
        %v694 = vsub.s32 %v691, %v693
        %v695 = vrot.slane %v380, %v694
        %v697 = vunpack.c.l.s4 1966171168
        %v698 = vunpack.c.0.s8 %v697
        %v699 = vlaneseq
        %v700 = vshrl.u32 %v699, 7
        %v701 = vsub.s32 %v698, %v700
        %v702 = vrot.slane %v688, %v701
        %v703 = vcombine.high %v695, %v695
        %v704 = vcombine.high %v702, %v702
        %v706 = vunpack.c.l.s4 1966171168
        %v707 = vunpack.c.0.s8 %v706
        %v708 = vlaneseq
        %v709 = vshrl.u32 %v708, 7
        %v710 = vsub.s32 %v707, %v709
        %v711 = vrot.slane %v695, %v710
        %v713 = vunpack.c.l.s4 1966171168
        %v714 = vunpack.c.0.s8 %v713
        %v715 = vlaneseq
        %v716 = vshrl.u32 %v715, 7
        %v717 = vsub.s32 %v714, %v716
        %v718 = vrot.slane %v702, %v717
        %v720 = vunpack.c.l.s4 1966171168
        %v721 = vunpack.c.0.s8 %v720
        %v722 = vlaneseq
        %v723 = vshrl.u32 %v722, 7
        %v724 = vsub.s32 %v721, %v723
        %v725 = vrot.slane %v703, %v724
        %v727 = vunpack.c.l.s4 1966171168
        %v728 = vunpack.c.0.s8 %v727
        %v729 = vlaneseq
        %v730 = vshrl.u32 %v729, 7
        %v731 = vsub.s32 %v728, %v730
        %v732 = vrot.slane %v704, %v731
        %v733 = vcombine.high %v711, %v711
        %v734 = vcombine.high %v718, %v718
        %v735 = vcombine.high %v725, %v725
        %v736 = vcombine.high %v732, %v732
        %v1009 = vunpack.c.l.b16 %v381
        %v1010 = vunpack.c.l.b16 %v382
        %v1011 = vunpack.c.l.b16 %v383
        %v1012 = vunpack.c.l.b16 %v384
        %v1013 = vunpack.c.l.b16 %v385
        %v1014 = vunpack.c.l.b16 %v386
        %v1015 = vunpack.c.l.b16 %v387
        %v1016 = vunpack.c.l.b16 %v388
        %v1017 = vunpack.c.l.b16 %v389
        %v1018 = vunpack.c.l.b16 %v390
        %v1019 = vunpack.c.l.b16 %v391
        %v1020 = vunpack.c.l.b16 %v392
        %v1021 = vunpack.c.l.b16 %v393
        %v1022 = vunpack.c.l.b16 %v394
        %v1023 = vunpack.c.l.b16 %v395
        %v1024 = vunpack.c.l.b16 %v396
        %v1025 = vunpack.c.l.b16 %v397
        %v1026 = vunpack.c.l.b16 %v398
        %v1027 = vunpack.c.l.b16 %v399
        %v1028 = vunpack.c.l.b16 %v400
        %v1029 = vunpack.c.l.b16 %v401
        %v1030 = vunpack.c.l.b16 %v402
        %v1031 = vunpack.c.l.b16 %v403
        %v1032 = vunpack.c.l.b16 %v404
        %v1033 = vunpack.c.l.b16 %v405
        %v1034 = vunpack.c.l.b16 %v406
        %v1035 = vunpack.c.l.b16 %v407
        %v1036 = vunpack.c.l.b16 %v408
        %v1037 = vunpack.c.l.b16 %v409
        %v1038 = vunpack.c.l.b16 %v410
        %v1039 = vunpack.c.l.b16 %v411
        %v1040 = vunpack.c.l.b16 %v412
        %v1041 = vunpack.c.l.b16 %v413
        %v1042 = vunpack.c.l.b16 %v414
        %v1043 = vunpack.c.l.b16 %v415
        %v1044 = vunpack.c.l.b16 %v416
        %v1045 = vunpack.c.l.b16 %v417
        %v1046 = vunpack.c.l.b16 %v418
        %v1047 = vunpack.c.l.b16 %v419
        %v1048 = vunpack.c.l.b16 %v420
        %v1049 = vunpack.c.l.b16 %v421
        %v1050 = vunpack.c.l.b16 %v422
        %v1051 = vunpack.c.l.b16 %v423
        %v1052 = vunpack.c.l.b16 %v424
        %v1053 = vunpack.c.l.b16 %v425
        %v1054 = vunpack.c.l.b16 %v426
        %v1055 = vunpack.c.l.b16 %v427
        %v1056 = vunpack.c.l.b16 %v428
        %v1057 = vunpack.c.l.b16 %v429
        %v1058 = vunpack.c.l.b16 %v430
        %v1059 = vunpack.c.l.b16 %v431
        %v1060 = vunpack.c.l.b16 %v432
        %v1061 = vunpack.c.l.b16 %v433
        %v1062 = vunpack.c.l.b16 %v434
        %v1063 = vunpack.c.l.b16 %v435
        %v1064 = vunpack.c.l.b16 %v436
        %v1065 = vunpack.c.l.b16 %v437
        %v1066 = vunpack.c.l.b16 %v438
        %v1067 = vunpack.c.l.b16 %v439
        %v1068 = vunpack.c.l.b16 %v440
        %v1069 = vunpack.c.l.b16 %v441
        %v1070 = vunpack.c.l.b16 %v442
        %v1071 = vunpack.c.l.b16 %v443
        %v1072 = vunpack.c.l.b16 %v444
        %v1073 = vunpack.c.l.b16 %v445
        %v1074 = vunpack.c.l.b16 %v446
        %v1075 = vunpack.c.l.b16 %v447
        %v1076 = vunpack.c.l.b16 %v448
        %v1077 = vunpack.c.l.b16 %v449
        %v1078 = vunpack.c.l.b16 %v450
        %v1079 = vunpack.c.l.b16 %v451
        %v1080 = vunpack.c.l.b16 %v452
        %v1081 = vunpack.c.l.b16 %v453
        %v1082 = vunpack.c.l.b16 %v454
        %v1083 = vunpack.c.l.b16 %v455
        %v1084 = vunpack.c.l.b16 %v456
        %v1085 = vunpack.c.l.b16 %v457
        %v1086 = vunpack.c.l.b16 %v458
        %v1087 = vunpack.c.l.b16 %v459
        %v1088 = vunpack.c.l.b16 %v460
        %v1089 = vunpack.c.l.b16 %v461
        %v1090 = vunpack.c.l.b16 %v462
        %v1091 = vunpack.c.l.b16 %v463
        %v1092 = vunpack.c.l.b16 %v464
        %v1093 = vunpack.c.l.b16 %v465
        %v1094 = vunpack.c.l.b16 %v466
        %v1095 = vunpack.c.l.b16 %v467
        %v1096 = vunpack.c.l.b16 %v468
        %v1097 = vunpack.c.l.b16 %v469
        %v1098 = vunpack.c.l.b16 %v470
        %v1099 = vunpack.c.l.b16 %v471
        %v1100 = vunpack.c.l.b16 %v472
        %v1101 = vunpack.c.l.b16 %v473
        %v1102 = vunpack.c.l.b16 %v474
        %v1103 = vunpack.c.l.b16 %v475
        %v1104 = vunpack.c.l.b16 %v476
        %v1105 = vunpack.c.l.b16 %v477
        %v1106 = vunpack.c.l.b16 %v478
        %v1107 = vunpack.c.l.b16 %v479
        %v1108 = vunpack.c.l.b16 %v480
        %v1109 = vunpack.c.l.b16 %v481
        %v1110 = vunpack.c.l.b16 %v482
        %v1111 = vunpack.c.l.b16 %v483
        %v1112 = vunpack.c.l.b16 %v484
        %v1113 = vunpack.c.l.b16 %v485
        %v1114 = vunpack.c.l.b16 %v486
        %v1115 = vunpack.c.l.b16 %v487
        %v1116 = vunpack.c.l.b16 %v488
        %v1117 = vunpack.c.l.b16 %v489
        %v1118 = vunpack.c.l.b16 %v490
        %v1119 = vunpack.c.l.b16 %v491
        %v1120 = vunpack.c.l.b16 %v492
        %v1121 = vunpack.c.l.b16 %v493
        %v1122 = vunpack.c.l.b16 %v494
        %v1123 = vunpack.c.l.b16 %v495
        %v1124 = vunpack.c.l.b16 %v496
        %v1125 = vunpack.c.l.b16 %v497
        %v1126 = vunpack.c.l.b16 %v498
        %v1127 = vunpack.c.l.b16 %v499
        %v1128 = vunpack.c.l.b16 %v500
        %v1129 = vunpack.c.l.b16 %v501
        %v1130 = vunpack.c.l.b16 %v502
        %v1131 = vunpack.c.l.b16 %v503
        %v1132 = vunpack.c.l.b16 %v504
        %v1133 = vunpack.c.l.b16 %v505
        %v1134 = vunpack.c.l.b16 %v506
        %v1135 = vunpack.c.l.b16 %v507
        %v1136 = vunpack.c.l.b16 %v508
        %v1137 = vunpack.c.l.b16 %v509
        %v1138 = vunpack.c.l.b16 %v510
        %v1139 = vunpack.c.l.b16 %v511
        %v1140 = vunpack.c.l.b16 %v512
        %v1141 = vunpack.c.l.b16 %v513
        %v1142 = vunpack.c.l.b16 %v514
        %v1143 = vunpack.c.l.b16 %v515
        %v1144 = vunpack.c.l.b16 %v516
        %v1145 = vunpack.c.l.b16 %v517
        %v1146 = vunpack.c.l.b16 %v518
        %v1147 = vunpack.c.l.b16 %v519
        %v1148 = vunpack.c.l.b16 %v520
        %v1149 = vunpack.c.l.b16 %v521
        %v1150 = vunpack.c.l.b16 %v522
        %v1151 = vunpack.c.l.b16 %v523
        %v1152 = vunpack.c.l.b16 %v524
        %v1153 = vunpack.c.l.b16 %v525
        %v1154 = vunpack.c.l.b16 %v526
        %v1155 = vunpack.c.l.b16 %v527
        %v1156 = vunpack.c.l.b16 %v528
        %v1157 = vunpack.c.l.b16 %v529
        %v1158 = vunpack.c.l.b16 %v530
        %v1159 = vunpack.c.l.b16 %v531
        %v1160 = vunpack.c.l.b16 %v532
        %v1161 = vunpack.c.l.b16 %v533
        %v1162 = vunpack.c.l.b16 %v534
        %v1163 = vunpack.c.l.b16 %v535
        %v1164 = vunpack.c.l.b16 %v536
        %v1165 = vunpack.c.l.b16 %v537
        %v1166 = vunpack.c.l.b16 %v538
        %v1167 = vunpack.c.l.b16 %v539
        %v1168 = vunpack.c.l.b16 %v540
        %v1169 = vunpack.c.l.b16 %v541
        %v1170 = vunpack.c.l.b16 %v542
        %v1171 = vunpack.c.l.b16 %v543
        %v1172 = vunpack.c.l.b16 %v544
        %v1173 = vunpack.c.l.b16 %v545
        %v1174 = vunpack.c.l.b16 %v546
        %v1175 = vunpack.c.l.b16 %v547
        %v1176 = vunpack.c.l.b16 %v548
        %v1177 = vunpack.c.l.b16 %v549
        %v1178 = vunpack.c.l.b16 %v550
        %v1179 = vunpack.c.l.b16 %v551
        %v1180 = vunpack.c.l.b16 %v552
        %v1181 = vunpack.c.l.b16 %v553
        %v1182 = vunpack.c.l.b16 %v554
        %v1183 = vunpack.c.l.b16 %v555
        %v1184 = vunpack.c.l.b16 %v556
        %v1185 = vunpack.c.l.b16 %v557
        %v1186 = vunpack.c.l.b16 %v558
        %v1187 = vunpack.c.l.b16 %v559
        %v1188 = vunpack.c.l.b16 %v560
        %v1189 = vunpack.c.l.b16 %v561
        %v1190 = vunpack.c.l.b16 %v562
        %v1191 = vunpack.c.l.b16 %v563
        %v1192 = vunpack.c.l.b16 %v564
        %v1193 = vunpack.c.l.b16 %v565
        %v1194 = vunpack.c.l.b16 %v566
        %v1195 = vunpack.c.l.b16 %v567
        %v1196 = vunpack.c.l.b16 %v568
        %v1197 = vunpack.c.l.b16 %v569
        %v1198 = vunpack.c.l.b16 %v570
        %v1199 = vunpack.c.l.b16 %v571
        %v1200 = vunpack.c.l.b16 %v572
        %v1201 = vunpack.c.l.b16 %v573
        %v1202 = vunpack.c.l.b16 %v574
        %v1203 = vunpack.c.l.b16 %v575
        %v1204 = vunpack.c.l.b16 %v576
        %v1205 = vunpack.c.l.b16 %v577
        %v1206 = vunpack.c.l.b16 %v578
        %v1207 = vunpack.c.l.b16 %v579
        %v1208 = vunpack.c.l.b16 %v580
        %v1209 = vunpack.c.l.b16 %v581
        %v1210 = vunpack.c.l.b16 %v582
        %v1211 = vunpack.c.l.b16 %v583
        %v1212 = vunpack.c.l.b16 %v584
        %v1213 = vunpack.c.l.b16 %v585
        %v1214 = vunpack.c.l.b16 %v586
        %v1215 = vunpack.c.l.b16 %v587
        %v1216 = vunpack.c.l.b16 %v588
        %v1217 = vunpack.c.l.b16 %v589
        %v1218 = vunpack.c.l.b16 %v590
        %v1219 = vunpack.c.l.b16 %v591
        %v1220 = vunpack.c.l.b16 %v592
        %v1221 = vunpack.c.l.b16 %v593
        %v1222 = vunpack.c.l.b16 %v594
        %v1223 = vunpack.c.l.b16 %v595
        %v1224 = vunpack.c.l.b16 %v596
        %v1225 = vunpack.c.l.b16 %v597
        %v1226 = vunpack.c.l.b16 %v598
        %v1227 = vunpack.c.l.b16 %v599
        %v1228 = vunpack.c.l.b16 %v600
        %v1229 = vunpack.c.l.b16 %v601
        %v1230 = vunpack.c.l.b16 %v602
        %v1231 = vunpack.c.l.b16 %v603
        %v1232 = vunpack.c.l.b16 %v604
        %v1233 = vunpack.c.l.b16 %v605
        %v1234 = vunpack.c.l.b16 %v606
        %v1235 = vunpack.c.l.b16 %v607
        %v1236 = vunpack.c.l.b16 %v608
        %v1237 = vunpack.c.l.b16 %v609
        %v1238 = vunpack.c.l.b16 %v610
        %v1239 = vunpack.c.l.b16 %v611
        %v1240 = vunpack.c.l.b16 %v612
        %v1241 = vunpack.c.l.b16 %v613
        %v1242 = vunpack.c.l.b16 %v614
        %v1243 = vunpack.c.l.b16 %v615
        %v1244 = vunpack.c.l.b16 %v616
        %v1245 = vunpack.c.l.b16 %v617
        %v1246 = vunpack.c.l.b16 %v618
        %v1247 = vunpack.c.l.b16 %v619
        %v1248 = vunpack.c.l.b16 %v620
        %v1249 = vunpack.c.l.b16 %v621
        %v1250 = vunpack.c.l.b16 %v622
        %v1251 = vunpack.c.l.b16 %v623
        %v1252 = vunpack.c.l.b16 %v624
        %v1253 = vunpack.c.l.b16 %v625
        %v1254 = vunpack.c.l.b16 %v626
        %v1255 = vunpack.c.l.b16 %v627
        %v1256 = vunpack.c.l.b16 %v628
        %v1257 = vunpack.c.l.b16 %v629
        %v1258 = vunpack.c.l.b16 %v630
        %v1259 = vunpack.c.l.b16 %v631
        %v1260 = vunpack.c.l.b16 %v632
        %v1261 = vunpack.c.l.b16 %v633
        %v1262 = vunpack.c.l.b16 %v634
        %v1263 = vunpack.c.l.b16 %v635
        %v1264 = vunpack.c.l.b16 %v636
        %v1265 = vpack.c.b16 %v1010, %v1009
        %v1266 = vpack.c.b16 %v1012, %v1011
        %v1267 = vpack.c.b16 %v1014, %v1013
        %v1268 = vpack.c.b16 %v1016, %v1015
        %v1269 = vpack.c.b16 %v1018, %v1017
        %v1270 = vpack.c.b16 %v1020, %v1019
        %v1271 = vpack.c.b16 %v1022, %v1021
        %v1272 = vpack.c.b16 %v1024, %v1023
        %v1273 = vpack.c.b16 %v1026, %v1025
        %v1274 = vpack.c.b16 %v1028, %v1027
        %v1275 = vpack.c.b16 %v1030, %v1029
        %v1276 = vpack.c.b16 %v1032, %v1031
        %v1277 = vpack.c.b16 %v1034, %v1033
        %v1278 = vpack.c.b16 %v1036, %v1035
        %v1279 = vpack.c.b16 %v1038, %v1037
        %v1280 = vpack.c.b16 %v1040, %v1039
        %v1281 = vpack.c.b16 %v1042, %v1041
        %v1282 = vpack.c.b16 %v1044, %v1043
        %v1283 = vpack.c.b16 %v1046, %v1045
        %v1284 = vpack.c.b16 %v1048, %v1047
        %v1285 = vpack.c.b16 %v1050, %v1049
        %v1286 = vpack.c.b16 %v1052, %v1051
        %v1287 = vpack.c.b16 %v1054, %v1053
        %v1288 = vpack.c.b16 %v1056, %v1055
        %v1289 = vpack.c.b16 %v1058, %v1057
        %v1290 = vpack.c.b16 %v1060, %v1059
        %v1291 = vpack.c.b16 %v1062, %v1061
        %v1292 = vpack.c.b16 %v1064, %v1063
        %v1293 = vpack.c.b16 %v1066, %v1065
        %v1294 = vpack.c.b16 %v1068, %v1067
        %v1295 = vpack.c.b16 %v1070, %v1069
        %v1296 = vpack.c.b16 %v1072, %v1071
        %v1297 = vpack.c.b16 %v1074, %v1073
        %v1298 = vpack.c.b16 %v1076, %v1075
        %v1299 = vpack.c.b16 %v1078, %v1077
        %v1300 = vpack.c.b16 %v1080, %v1079
        %v1301 = vpack.c.b16 %v1082, %v1081
        %v1302 = vpack.c.b16 %v1084, %v1083
        %v1303 = vpack.c.b16 %v1086, %v1085
        %v1304 = vpack.c.b16 %v1088, %v1087
        %v1305 = vpack.c.b16 %v1090, %v1089
        %v1306 = vpack.c.b16 %v1092, %v1091
        %v1307 = vpack.c.b16 %v1094, %v1093
        %v1308 = vpack.c.b16 %v1096, %v1095
        %v1309 = vpack.c.b16 %v1098, %v1097
        %v1310 = vpack.c.b16 %v1100, %v1099
        %v1311 = vpack.c.b16 %v1102, %v1101
        %v1312 = vpack.c.b16 %v1104, %v1103
        %v1313 = vpack.c.b16 %v1106, %v1105
        %v1314 = vpack.c.b16 %v1108, %v1107
        %v1315 = vpack.c.b16 %v1110, %v1109
        %v1316 = vpack.c.b16 %v1112, %v1111
        %v1317 = vpack.c.b16 %v1114, %v1113
        %v1318 = vpack.c.b16 %v1116, %v1115
        %v1319 = vpack.c.b16 %v1118, %v1117
        %v1320 = vpack.c.b16 %v1120, %v1119
        %v1321 = vpack.c.b16 %v1122, %v1121
        %v1322 = vpack.c.b16 %v1124, %v1123
        %v1323 = vpack.c.b16 %v1126, %v1125
        %v1324 = vpack.c.b16 %v1128, %v1127
        %v1325 = vpack.c.b16 %v1130, %v1129
        %v1326 = vpack.c.b16 %v1132, %v1131
        %v1327 = vpack.c.b16 %v1134, %v1133
        %v1328 = vpack.c.b16 %v1136, %v1135
        %v1329 = vpack.c.b16 %v1138, %v1137
        %v1330 = vpack.c.b16 %v1140, %v1139
        %v1331 = vpack.c.b16 %v1142, %v1141
        %v1332 = vpack.c.b16 %v1144, %v1143
        %v1333 = vpack.c.b16 %v1146, %v1145
        %v1334 = vpack.c.b16 %v1148, %v1147
        %v1335 = vpack.c.b16 %v1150, %v1149
        %v1336 = vpack.c.b16 %v1152, %v1151
        %v1337 = vpack.c.b16 %v1154, %v1153
        %v1338 = vpack.c.b16 %v1156, %v1155
        %v1339 = vpack.c.b16 %v1158, %v1157
        %v1340 = vpack.c.b16 %v1160, %v1159
        %v1341 = vpack.c.b16 %v1162, %v1161
        %v1342 = vpack.c.b16 %v1164, %v1163
        %v1343 = vpack.c.b16 %v1166, %v1165
        %v1344 = vpack.c.b16 %v1168, %v1167
        %v1345 = vpack.c.b16 %v1170, %v1169
        %v1346 = vpack.c.b16 %v1172, %v1171
        %v1347 = vpack.c.b16 %v1174, %v1173
        %v1348 = vpack.c.b16 %v1176, %v1175
        %v1349 = vpack.c.b16 %v1178, %v1177
        %v1350 = vpack.c.b16 %v1180, %v1179
        %v1351 = vpack.c.b16 %v1182, %v1181
        %v1352 = vpack.c.b16 %v1184, %v1183
        %v1353 = vpack.c.b16 %v1186, %v1185
        %v1354 = vpack.c.b16 %v1188, %v1187
        %v1355 = vpack.c.b16 %v1190, %v1189
        %v1356 = vpack.c.b16 %v1192, %v1191
        %v1357 = vpack.c.b16 %v1194, %v1193
        %v1358 = vpack.c.b16 %v1196, %v1195
        %v1359 = vpack.c.b16 %v1198, %v1197
        %v1360 = vpack.c.b16 %v1200, %v1199
        %v1361 = vpack.c.b16 %v1202, %v1201
        %v1362 = vpack.c.b16 %v1204, %v1203
        %v1363 = vpack.c.b16 %v1206, %v1205
        %v1364 = vpack.c.b16 %v1208, %v1207
        %v1365 = vpack.c.b16 %v1210, %v1209
        %v1366 = vpack.c.b16 %v1212, %v1211
        %v1367 = vpack.c.b16 %v1214, %v1213
        %v1368 = vpack.c.b16 %v1216, %v1215
        %v1369 = vpack.c.b16 %v1218, %v1217
        %v1370 = vpack.c.b16 %v1220, %v1219
        %v1371 = vpack.c.b16 %v1222, %v1221
        %v1372 = vpack.c.b16 %v1224, %v1223
        %v1373 = vpack.c.b16 %v1226, %v1225
        %v1374 = vpack.c.b16 %v1228, %v1227
        %v1375 = vpack.c.b16 %v1230, %v1229
        %v1376 = vpack.c.b16 %v1232, %v1231
        %v1377 = vpack.c.b16 %v1234, %v1233
        %v1378 = vpack.c.b16 %v1236, %v1235
        %v1379 = vpack.c.b16 %v1238, %v1237
        %v1380 = vpack.c.b16 %v1240, %v1239
        %v1381 = vpack.c.b16 %v1242, %v1241
        %v1382 = vpack.c.b16 %v1244, %v1243
        %v1383 = vpack.c.b16 %v1246, %v1245
        %v1384 = vpack.c.b16 %v1248, %v1247
        %v1385 = vpack.c.b16 %v1250, %v1249
        %v1386 = vpack.c.b16 %v1252, %v1251
        %v1387 = vpack.c.b16 %v1254, %v1253
        %v1388 = vpack.c.b16 %v1256, %v1255
        %v1389 = vpack.c.b16 %v1258, %v1257
        %v1390 = vpack.c.b16 %v1260, %v1259
        %v1391 = vpack.c.b16 %v1262, %v1261
        %v1392 = vpack.c.b16 %v1264, %v1263
        %1521 = vmatprep.subr.bf16.mxu0 0
        %1522 = vmatpush1.bf16.msra.mxu0 %v1265
        %1523 = vmatprep.subr.bf16.mxu0 0
        %1524 = vmatpush1.bf16.msra.mxu0 %v1266
        %1525 = vmatprep.subr.bf16.mxu0 0
        %1526 = vmatpush1.bf16.msra.mxu0 %v1267
        %1527 = vmatprep.subr.bf16.mxu0 0
        %1528 = vmatpush1.bf16.msra.mxu0 %v1268
        %1529 = vmatprep.subr.bf16.mxu0 0
        %1530 = vmatpush1.bf16.msra.mxu0 %v1269
        %1531 = vmatprep.subr.bf16.mxu0 0
        %1532 = vmatpush1.bf16.msra.mxu0 %v1270
        %1533 = vmatprep.subr.bf16.mxu0 0
        %1534 = vmatpush1.bf16.msra.mxu0 %v1271
        %1535 = vmatprep.subr.bf16.mxu0 0
        %1536 = vmatpush1.bf16.msra.mxu0 %v1272
        %1537 = vmatprep.subr.bf16.mxu0 0
        %1538 = vmatpush1.bf16.msra.mxu0 %v1273
        %1539 = vmatprep.subr.bf16.mxu0 0
        %1540 = vmatpush1.bf16.msra.mxu0 %v1274
        %1541 = vmatprep.subr.bf16.mxu0 0
        %1542 = vmatpush1.bf16.msra.mxu0 %v1275
        %1543 = vmatprep.subr.bf16.mxu0 0
        %1544 = vmatpush1.bf16.msra.mxu0 %v1276
        %1545 = vmatprep.subr.bf16.mxu0 0
        %1546 = vmatpush1.bf16.msra.mxu0 %v1277
        %1547 = vmatprep.subr.bf16.mxu0 0
        %1548 = vmatpush1.bf16.msra.mxu0 %v1278
        %1549 = vmatprep.subr.bf16.mxu0 0
        %1550 = vmatpush1.bf16.msra.mxu0 %v1279
        %1551 = vmatprep.subr.bf16.mxu0 0
        %1552 = vmatpush1.bf16.msra.mxu0 %v1280
        %1553 = vmatprep.mubr.bf16.mxu0 %v676
        %1554 = vmatmul.mubr.bf16.gmra.mrb[0].mxu0 %v662
        %v1555 = vpop.f32.mrb[0].mxu0
        %v1556 = vadd.f32 0.0, %v1555
        %v1557 = vpop.f32.mrb[0].mxu0
        %v1558 = vpop.f32.mrb[0].mxu0
        %v1559 = vpop.f32.mrb[0].mxu0
        %1560 = vdwg.mxu0
        %1561 = vmatprep.subr.bf16.mxu0 0
        %1562 = vmatpush1.bf16.msra.mxu0 %v1281
        %1563 = vmatprep.subr.bf16.mxu0 0
        %1564 = vmatpush1.bf16.msra.mxu0 %v1282
        %1565 = vmatprep.subr.bf16.mxu0 0
        %1566 = vmatpush1.bf16.msra.mxu0 %v1283
        %1567 = vmatprep.subr.bf16.mxu0 0
        %1568 = vmatpush1.bf16.msra.mxu0 %v1284
        %1569 = vmatprep.subr.bf16.mxu0 0
        %1570 = vmatpush1.bf16.msra.mxu0 %v1285
        %1571 = vmatprep.subr.bf16.mxu0 0
        %1572 = vmatpush1.bf16.msra.mxu0 %v1286
        %1573 = vmatprep.subr.bf16.mxu0 0
        %1574 = vmatpush1.bf16.msra.mxu0 %v1287
        %1575 = vmatprep.subr.bf16.mxu0 0
        %1576 = vmatpush1.bf16.msra.mxu0 %v1288
        %1577 = vmatprep.subr.bf16.mxu0 0
        %1578 = vmatpush1.bf16.msra.mxu0 %v1289
        %1579 = vmatprep.subr.bf16.mxu0 0
        %1580 = vmatpush1.bf16.msra.mxu0 %v1290
        %1581 = vmatprep.subr.bf16.mxu0 0
        %1582 = vmatpush1.bf16.msra.mxu0 %v1291
        %1583 = vmatprep.subr.bf16.mxu0 0
        %1584 = vmatpush1.bf16.msra.mxu0 %v1292
        %1585 = vmatprep.subr.bf16.mxu0 0
        %1586 = vmatpush1.bf16.msra.mxu0 %v1293
        %1587 = vmatprep.subr.bf16.mxu0 0
        %1588 = vmatpush1.bf16.msra.mxu0 %v1294
        %1589 = vmatprep.subr.bf16.mxu0 0
        %1590 = vmatpush1.bf16.msra.mxu0 %v1295
        %1591 = vmatprep.subr.bf16.mxu0 0
        %1592 = vmatpush1.bf16.msra.mxu0 %v1296
        %1593 = vmatprep.mubr.bf16.mxu0 %v686
        %1594 = vmatmul.mubr.bf16.gmra.mrb[0].mxu0 %v684
        %v1595 = vpop.f32.mrb[0].mxu0
        %v1596 = vadd.f32 %v1556, %v1595
        %v1597 = vpop.f32.mrb[0].mxu0
        %v1598 = vpop.f32.mrb[0].mxu0
        %v1599 = vpop.f32.mrb[0].mxu0
        %1600 = vdwg.mxu0
        %1601 = vmatprep.subr.bf16.mxu0 0
        %1602 = vmatpush1.bf16.msra.mxu0 %v1297
        %1603 = vmatprep.subr.bf16.mxu0 0
        %1604 = vmatpush1.bf16.msra.mxu0 %v1298
        %1605 = vmatprep.subr.bf16.mxu0 0
        %1606 = vmatpush1.bf16.msra.mxu0 %v1299
        %1607 = vmatprep.subr.bf16.mxu0 0
        %1608 = vmatpush1.bf16.msra.mxu0 %v1300
        %1609 = vmatprep.subr.bf16.mxu0 0
        %1610 = vmatpush1.bf16.msra.mxu0 %v1301
        %1611 = vmatprep.subr.bf16.mxu0 0
        %1612 = vmatpush1.bf16.msra.mxu0 %v1302
        %1613 = vmatprep.subr.bf16.mxu0 0
        %1614 = vmatpush1.bf16.msra.mxu0 %v1303
        %1615 = vmatprep.subr.bf16.mxu0 0
        %1616 = vmatpush1.bf16.msra.mxu0 %v1304
        %1617 = vmatprep.subr.bf16.mxu0 0
        %1618 = vmatpush1.bf16.msra.mxu0 %v1305
        %1619 = vmatprep.subr.bf16.mxu0 0
        %1620 = vmatpush1.bf16.msra.mxu0 %v1306
        %1621 = vmatprep.subr.bf16.mxu0 0
        %1622 = vmatpush1.bf16.msra.mxu0 %v1307
        %1623 = vmatprep.subr.bf16.mxu0 0
        %1624 = vmatpush1.bf16.msra.mxu0 %v1308
        %1625 = vmatprep.subr.bf16.mxu0 0
        %1626 = vmatpush1.bf16.msra.mxu0 %v1309
        %1627 = vmatprep.subr.bf16.mxu0 0
        %1628 = vmatpush1.bf16.msra.mxu0 %v1310
        %1629 = vmatprep.subr.bf16.mxu0 0
        %1630 = vmatpush1.bf16.msra.mxu0 %v1311
        %1631 = vmatprep.subr.bf16.mxu0 0
        %1632 = vmatpush1.bf16.msra.mxu0 %v1312
        %1633 = vmatprep.mubr.bf16.mxu0 %v683
        %1634 = vmatmul.mubr.bf16.gmra.mrb[0].mxu0 %v669
        %v1635 = vpop.f32.mrb[0].mxu0
        %v1636 = vadd.f32 %v1596, %v1635
        %v1637 = vpop.f32.mrb[0].mxu0
        %v1638 = vpop.f32.mrb[0].mxu0
        %v1639 = vpop.f32.mrb[0].mxu0
        %1640 = vdwg.mxu0
        %1641 = vmatprep.subr.bf16.mxu0 0
        %1642 = vmatpush1.bf16.msra.mxu0 %v1313
        %1643 = vmatprep.subr.bf16.mxu0 0
        %1644 = vmatpush1.bf16.msra.mxu0 %v1314
        %1645 = vmatprep.subr.bf16.mxu0 0
        %1646 = vmatpush1.bf16.msra.mxu0 %v1315
        %1647 = vmatprep.subr.bf16.mxu0 0
        %1648 = vmatpush1.bf16.msra.mxu0 %v1316
        %1649 = vmatprep.subr.bf16.mxu0 0
        %1650 = vmatpush1.bf16.msra.mxu0 %v1317
        %1651 = vmatprep.subr.bf16.mxu0 0
        %1652 = vmatpush1.bf16.msra.mxu0 %v1318
        %1653 = vmatprep.subr.bf16.mxu0 0
        %1654 = vmatpush1.bf16.msra.mxu0 %v1319
        %1655 = vmatprep.subr.bf16.mxu0 0
        %1656 = vmatpush1.bf16.msra.mxu0 %v1320
        %1657 = vmatprep.subr.bf16.mxu0 0
        %1658 = vmatpush1.bf16.msra.mxu0 %v1321
        %1659 = vmatprep.subr.bf16.mxu0 0
        %1660 = vmatpush1.bf16.msra.mxu0 %v1322
        %1661 = vmatprep.subr.bf16.mxu0 0
        %1662 = vmatpush1.bf16.msra.mxu0 %v1323
        %1663 = vmatprep.subr.bf16.mxu0 0
        %1664 = vmatpush1.bf16.msra.mxu0 %v1324
        %1665 = vmatprep.subr.bf16.mxu0 0
        %1666 = vmatpush1.bf16.msra.mxu0 %v1325
        %1667 = vmatprep.subr.bf16.mxu0 0
        %1668 = vmatpush1.bf16.msra.mxu0 %v1326
        %1669 = vmatprep.subr.bf16.mxu0 0
        %1670 = vmatpush1.bf16.msra.mxu0 %v1327
        %1671 = vmatprep.subr.bf16.mxu0 0
        %1672 = vmatpush1.bf16.msra.mxu0 %v1328
        %1673 = vmatprep.mubr.bf16.mxu0 %v687
        %1674 = vmatmul.mubr.bf16.gmra.mrb[0].mxu0 %v685
        %v1675 = vpop.f32.mrb[0].mxu0
        %v1676 = vadd.f32 %v1636, %v1675
        %v1677 = vpop.f32.mrb[0].mxu0
        %v1678 = vpop.f32.mrb[0].mxu0
        %v1679 = vpop.f32.mrb[0].mxu0
        %1680 = vdwg.mxu0
        %1681 = vmatprep.subr.bf16.mxu0 0
        %1682 = vmatpush1.bf16.msra.mxu0 %v1329
        %1683 = vmatprep.subr.bf16.mxu0 0
        %1684 = vmatpush1.bf16.msra.mxu0 %v1330
        %1685 = vmatprep.subr.bf16.mxu0 0
        %1686 = vmatpush1.bf16.msra.mxu0 %v1331
        %1687 = vmatprep.subr.bf16.mxu0 0
        %1688 = vmatpush1.bf16.msra.mxu0 %v1332
        %1689 = vmatprep.subr.bf16.mxu0 0
        %1690 = vmatpush1.bf16.msra.mxu0 %v1333
        %1691 = vmatprep.subr.bf16.mxu0 0
        %1692 = vmatpush1.bf16.msra.mxu0 %v1334
        %1693 = vmatprep.subr.bf16.mxu0 0
        %1694 = vmatpush1.bf16.msra.mxu0 %v1335
        %1695 = vmatprep.subr.bf16.mxu0 0
        %1696 = vmatpush1.bf16.msra.mxu0 %v1336
        %1697 = vmatprep.subr.bf16.mxu0 0
        %1698 = vmatpush1.bf16.msra.mxu0 %v1337
        %1699 = vmatprep.subr.bf16.mxu0 0
        %1700 = vmatpush1.bf16.msra.mxu0 %v1338
        %1701 = vmatprep.subr.bf16.mxu0 0
        %1702 = vmatpush1.bf16.msra.mxu0 %v1339
        %1703 = vmatprep.subr.bf16.mxu0 0
        %1704 = vmatpush1.bf16.msra.mxu0 %v1340
        %1705 = vmatprep.subr.bf16.mxu0 0
        %1706 = vmatpush1.bf16.msra.mxu0 %v1341
        %1707 = vmatprep.subr.bf16.mxu0 0
        %1708 = vmatpush1.bf16.msra.mxu0 %v1342
        %1709 = vmatprep.subr.bf16.mxu0 0
        %1710 = vmatpush1.bf16.msra.mxu0 %v1343
        %1711 = vmatprep.subr.bf16.mxu0 0
        %1712 = vmatpush1.bf16.msra.mxu0 %v1344
        %1713 = vmatprep.mubr.bf16.mxu0 %v725
        %1714 = vmatmul.mubr.bf16.gmra.mrb[0].mxu0 %v711
        %v1715 = vpop.f32.mrb[0].mxu0
        %v1716 = vadd.f32 %v1676, %v1715
        %v1717 = vpop.f32.mrb[0].mxu0
        %v1718 = vpop.f32.mrb[0].mxu0
        %v1719 = vpop.f32.mrb[0].mxu0
        %1720 = vdwg.mxu0
        %1721 = vmatprep.subr.bf16.mxu0 0
        %1722 = vmatpush1.bf16.msra.mxu0 %v1345
        %1723 = vmatprep.subr.bf16.mxu0 0
        %1724 = vmatpush1.bf16.msra.mxu0 %v1346
        %1725 = vmatprep.subr.bf16.mxu0 0
        %1726 = vmatpush1.bf16.msra.mxu0 %v1347
        %1727 = vmatprep.subr.bf16.mxu0 0
        %1728 = vmatpush1.bf16.msra.mxu0 %v1348
        %1729 = vmatprep.subr.bf16.mxu0 0
        %1730 = vmatpush1.bf16.msra.mxu0 %v1349
        %1731 = vmatprep.subr.bf16.mxu0 0
        %1732 = vmatpush1.bf16.msra.mxu0 %v1350
        %1733 = vmatprep.subr.bf16.mxu0 0
        %1734 = vmatpush1.bf16.msra.mxu0 %v1351
        %1735 = vmatprep.subr.bf16.mxu0 0
        %1736 = vmatpush1.bf16.msra.mxu0 %v1352
        %1737 = vmatprep.subr.bf16.mxu0 0
        %1738 = vmatpush1.bf16.msra.mxu0 %v1353
        %1739 = vmatprep.subr.bf16.mxu0 0
        %1740 = vmatpush1.bf16.msra.mxu0 %v1354
        %1741 = vmatprep.subr.bf16.mxu0 0
        %1742 = vmatpush1.bf16.msra.mxu0 %v1355
        %1743 = vmatprep.subr.bf16.mxu0 0
        %1744 = vmatpush1.bf16.msra.mxu0 %v1356
        %1745 = vmatprep.subr.bf16.mxu0 0
        %1746 = vmatpush1.bf16.msra.mxu0 %v1357
        %1747 = vmatprep.subr.bf16.mxu0 0
        %1748 = vmatpush1.bf16.msra.mxu0 %v1358
        %1749 = vmatprep.subr.bf16.mxu0 0
        %1750 = vmatpush1.bf16.msra.mxu0 %v1359
        %1751 = vmatprep.subr.bf16.mxu0 0
        %1752 = vmatpush1.bf16.msra.mxu0 %v1360
        %1753 = vmatprep.mubr.bf16.mxu0 %v735
        %1754 = vmatmul.mubr.bf16.gmra.mrb[0].mxu0 %v733
        %v1755 = vpop.f32.mrb[0].mxu0
        %v1756 = vadd.f32 %v1716, %v1755
        %v1757 = vpop.f32.mrb[0].mxu0
        %v1758 = vpop.f32.mrb[0].mxu0
        %v1759 = vpop.f32.mrb[0].mxu0
        %1760 = vdwg.mxu0
        %1761 = vmatprep.subr.bf16.mxu0 0
        %1762 = vmatpush1.bf16.msra.mxu0 %v1361
        %1763 = vmatprep.subr.bf16.mxu0 0
        %1764 = vmatpush1.bf16.msra.mxu0 %v1362
        %1765 = vmatprep.subr.bf16.mxu0 0
        %1766 = vmatpush1.bf16.msra.mxu0 %v1363
        %1767 = vmatprep.subr.bf16.mxu0 0
        %1768 = vmatpush1.bf16.msra.mxu0 %v1364
        %1769 = vmatprep.subr.bf16.mxu0 0
        %1770 = vmatpush1.bf16.msra.mxu0 %v1365
        %1771 = vmatprep.subr.bf16.mxu0 0
        %1772 = vmatpush1.bf16.msra.mxu0 %v1366
        %1773 = vmatprep.subr.bf16.mxu0 0
        %1774 = vmatpush1.bf16.msra.mxu0 %v1367
        %1775 = vmatprep.subr.bf16.mxu0 0
        %1776 = vmatpush1.bf16.msra.mxu0 %v1368
        %1777 = vmatprep.subr.bf16.mxu0 0
        %1778 = vmatpush1.bf16.msra.mxu0 %v1369
        %1779 = vmatprep.subr.bf16.mxu0 0
        %1780 = vmatpush1.bf16.msra.mxu0 %v1370
        %1781 = vmatprep.subr.bf16.mxu0 0
        %1782 = vmatpush1.bf16.msra.mxu0 %v1371
        %1783 = vmatprep.subr.bf16.mxu0 0
        %1784 = vmatpush1.bf16.msra.mxu0 %v1372
        %1785 = vmatprep.subr.bf16.mxu0 0
        %1786 = vmatpush1.bf16.msra.mxu0 %v1373
        %1787 = vmatprep.subr.bf16.mxu0 0
        %1788 = vmatpush1.bf16.msra.mxu0 %v1374
        %1789 = vmatprep.subr.bf16.mxu0 0
        %1790 = vmatpush1.bf16.msra.mxu0 %v1375
        %1791 = vmatprep.subr.bf16.mxu0 0
        %1792 = vmatpush1.bf16.msra.mxu0 %v1376
        %1793 = vmatprep.mubr.bf16.mxu0 %v732
        %1794 = vmatmul.mubr.bf16.gmra.mrb[0].mxu0 %v718
        %v1795 = vpop.f32.mrb[0].mxu0
        %v1796 = vadd.f32 %v1756, %v1795
        %v1797 = vpop.f32.mrb[0].mxu0
        %v1798 = vpop.f32.mrb[0].mxu0
        %v1799 = vpop.f32.mrb[0].mxu0
        %1800 = vdwg.mxu0
        %1801 = vmatprep.subr.bf16.mxu0 0
        %1802 = vmatpush1.bf16.msra.mxu0 %v1377
        %1803 = vmatprep.subr.bf16.mxu0 0
        %1804 = vmatpush1.bf16.msra.mxu0 %v1378
        %1805 = vmatprep.subr.bf16.mxu0 0
        %1806 = vmatpush1.bf16.msra.mxu0 %v1379
        %1807 = vmatprep.subr.bf16.mxu0 0
        %1808 = vmatpush1.bf16.msra.mxu0 %v1380
        %1809 = vmatprep.subr.bf16.mxu0 0
        %1810 = vmatpush1.bf16.msra.mxu0 %v1381
        %1811 = vmatprep.subr.bf16.mxu0 0
        %1812 = vmatpush1.bf16.msra.mxu0 %v1382
        %1813 = vmatprep.subr.bf16.mxu0 0
        %1814 = vmatpush1.bf16.msra.mxu0 %v1383
        %1815 = vmatprep.subr.bf16.mxu0 0
        %1816 = vmatpush1.bf16.msra.mxu0 %v1384
        %1817 = vmatprep.subr.bf16.mxu0 0
        %1818 = vmatpush1.bf16.msra.mxu0 %v1385
        %1819 = vmatprep.subr.bf16.mxu0 0
        %1820 = vmatpush1.bf16.msra.mxu0 %v1386
        %1821 = vmatprep.subr.bf16.mxu0 0
        %1822 = vmatpush1.bf16.msra.mxu0 %v1387
        %1823 = vmatprep.subr.bf16.mxu0 0
        %1824 = vmatpush1.bf16.msra.mxu0 %v1388
        %1825 = vmatprep.subr.bf16.mxu0 0
        %1826 = vmatpush1.bf16.msra.mxu0 %v1389
        %1827 = vmatprep.subr.bf16.mxu0 0
        %1828 = vmatpush1.bf16.msra.mxu0 %v1390
        %1829 = vmatprep.subr.bf16.mxu0 0
        %1830 = vmatpush1.bf16.msra.mxu0 %v1391
        %1831 = vmatprep.subr.bf16.mxu0 0
        %1832 = vmatpush1.bf16.msra.mxu0 %v1392
        %1833 = vmatprep.mubr.bf16.mxu0 %v736
        %1834 = vmatmul.mubr.bf16.gmra.mrb[0].mxu0 %v734
        %v1835 = vpop.f32.mrb[0].mxu0
        %v1836 = vadd.f32 %v1796, %v1835
        %v1837 = vpop.f32.mrb[0].mxu0
        %v1838 = vpop.f32.mrb[0].mxu0
        %v1839 = vpop.f32.mrb[0].mxu0
        %1840 = vdwg.mxu0
        %v1841 = vadd.f32 %v378, %v1836
        %vm1842 = vcmask 975872
        %1843 = vst.msk [vmem:[#allocation2] sm:$0x3] %vm1842, %v1841
        %p1844 = scmp.eq.s32.totalorder %s26, 5
        // Predicated region
        $region61: #{tpu_custom_call.1} parent=55 // pred_check
          %p1845 = pneg %p1844
        $region62: #{tpu_custom_call.1} parent=55 // pred_check_branch
          %1847 = sbr.rel (%p1845) target = $region64
        $region63: #{tpu_custom_call.1} parent=55 // pred_region
          %v1848 = vld [vmem:[#allocation2] sm:$0x3]
          %v1849 = vld [vmem:[%s2] sm:$0x1]
          %v1851 = vlaneseq
          %v1852 = vshrl.u32 %v1851, 7
          %v1853 = vsub.s32 0, %v1852
          %v1854 = vrot.slane %v1849, %v1853
          %v1856 = vadd.f32 %v1848, %v1854
          %v1857 = vmax.f32 %v1856, 0.0
          %v1858 = vld [vmem:[%s3] sm:$0xff]
          %v1859 = vld [vmem:[%s3 + $0x8] sm:$0xff]
          %v1860 = vld [vmem:[%s3 + $0x10] sm:$0xff]
          %v1861 = vld [vmem:[%s3 + $0x18] sm:$0xff]
          %v1862 = vld [vmem:[%s3 + $0x20] sm:$0xff]
          %v1863 = vld [vmem:[%s3 + $0x28] sm:$0xff]
          %v1864 = vld [vmem:[%s3 + $0x30] sm:$0xff]
          %v1865 = vld [vmem:[%s3 + $0x38] sm:$0xff]
          %v1866 = vld [vmem:[%s3 + $0x40] sm:$0xff]
          %v1867 = vld [vmem:[%s3 + $0x48] sm:$0xff]
          %v1868 = vld [vmem:[%s3 + $0x50] sm:$0xff]
          %v1869 = vld [vmem:[%s3 + $0x58] sm:$0xff]
          %v1870 = vld [vmem:[%s3 + $0x60] sm:$0xff]
          %v1871 = vld [vmem:[%s3 + $0x68] sm:$0xff]
          %v1872 = vld [vmem:[%s3 + $0x70] sm:$0xff]
          %v1873 = vld [vmem:[%s4] sm:$0x1]
          %v1875 = vlaneseq
          %v1876 = vshrl.u32 %v1875, 7
          %v1877 = vsub.s32 0, %v1876
          %v1878 = vrot.slane %v1873, %v1877
          %vm1880 = vcmask 982016
          %v1882 = vsel %vm1880, %v1857, 0
          %1884 = vmatprep.subr.mxu0 0.0
          %1885 = vmatpush1.msra.mxu0 %v1858
          %1886 = vmatprep.subr.mxu0 0.0
          %1887 = vmatpush1.msra.mxu0 %v1859
          %1888 = vmatprep.subr.mxu0 0.0
          %1889 = vmatpush1.msra.mxu0 %v1860
          %1890 = vmatprep.subr.mxu0 0.0
          %1891 = vmatpush1.msra.mxu0 %v1861
          %1892 = vmatprep.subr.mxu0 0.0
          %1893 = vmatpush1.msra.mxu0 %v1862
          %1894 = vmatprep.subr.mxu0 0.0
          %1895 = vmatpush1.msra.mxu0 %v1863
          %1896 = vmatprep.subr.mxu0 0.0
          %1897 = vmatpush1.msra.mxu0 %v1864
          %1898 = vmatprep.subr.mxu0 0.0
          %1899 = vmatpush1.msra.mxu0 %v1865
          %1900 = vmatprep.subr.mxu0 0.0
          %1901 = vmatpush1.msra.mxu0 %v1866
          %1902 = vmatprep.subr.mxu0 0.0
          %1903 = vmatpush1.msra.mxu0 %v1867
          %1904 = vmatprep.subr.mxu0 0.0
          %1905 = vmatpush1.msra.mxu0 %v1868
          %1906 = vmatprep.subr.mxu0 0.0
          %1907 = vmatpush1.msra.mxu0 %v1869
          %1908 = vmatprep.subr.mxu0 0.0
          %1909 = vmatpush1.msra.mxu0 %v1870
          %1910 = vmatprep.subr.mxu0 0.0
          %1911 = vmatpush1.msra.mxu0 %v1871
          %1912 = vmatprep.subr.mxu0 0.0
          %1913 = vmatpush1.msra.mxu0 %v1872
          %1914 = vmatprep.subr.mxu0 0.0
          %1915 = vmatpush1.msra.mxu0 0.0
          %1916 = vmatprep.subr.mxu0 0.0
          %1917 = vmatpush1.msra.mxu0 0.0
          %1918 = vmatprep.subr.mxu0 0.0
          %1919 = vmatpush1.msra.mxu0 0.0
          %1920 = vmatprep.subr.mxu0 0.0
          %1921 = vmatpush1.msra.mxu0 0.0
          %1922 = vmatprep.subr.mxu0 0.0
          %1923 = vmatpush1.msra.mxu0 0.0
          %1924 = vmatprep.subr.mxu0 0.0
          %1925 = vmatpush1.msra.mxu0 0.0
          %1926 = vmatprep.subr.mxu0 0.0
          %1927 = vmatpush1.msra.mxu0 0.0
          %1928 = vmatprep.subr.mxu0 0.0
          %1929 = vmatpush1.msra.mxu0 0.0
          %1930 = vmatprep.subr.mxu0 0.0
          %1931 = vmatpush1.msra.mxu0 0.0
          %1932 = vmatprep.subr.mxu0 0.0
          %1933 = vmatpush1.msra.mxu0 0.0
          %1934 = vmatprep.subr.mxu0 0.0
          %1935 = vmatpush1.msra.mxu0 0.0
          %1936 = vmatprep.subr.mxu0 0.0
          %1937 = vmatpush1.msra.mxu0 0.0
          %1938 = vmatprep.subr.mxu0 0.0
          %1939 = vmatpush1.msra.mxu0 0.0
          %1940 = vmatprep.subr.mxu0 0.0
          %1941 = vmatpush1.msra.mxu0 0.0
          %1942 = vmatprep.subr.mxu0 0.0
          %1943 = vmatpush1.msra.mxu0 0.0
          %1944 = vmatprep.subr.mxu0 0.0
          %1945 = vmatpush1.msra.mxu0 0.0
          %1946 = vmatprep.subr.mxu0 0.0
          %1947 = vmatpush1.msra.mxu0 0.0
          %1948 = vmatprep.mubr.f32.mxu0 0.0
          %1949 = vmatmul.mubr.f32.gmra.mrb[0].mxu0 %v1882
          %v1950 = vpop.f32.mrb[0].mxu0
          %v1951 = vadd.f32 %v1878, %v1950
          %v1952 = vpop.f32.mrb[0].mxu0
          %1953 = vdwg.mxu0
          %v1954 = vmax.f32 %v1951, 0.0
          %v1955 = vld [vmem:[%s5] sm:$0xff]
          %v1956 = vld [vmem:[%s5 + $0x8] sm:$0xff]
          %v1957 = vld [vmem:[%s5 + $0x10] sm:$0xff]
          %v1958 = vld [vmem:[%s5 + $0x18] sm:$0xff]
          %v1959 = vld [vmem:[%s5 + $0x20] sm:$0xff]
          %v1960 = vld [vmem:[%s5 + $0x28] sm:$0xff]
          %v1961 = vld [vmem:[%s5 + $0x30] sm:$0xff]
          %v1962 = vld [vmem:[%s5 + $0x38] sm:$0xff]
          %v1963 = vld [vmem:[%s5 + $0x40] sm:$0xff]
          %v1964 = vld [vmem:[%s5 + $0x48] sm:$0xff]
          %v1965 = vld [vmem:[%s5 + $0x50] sm:$0xf]
          %v1966 = vld [vmem:[%s6] sm:$0x1]
          %v1968 = vlaneseq
          %v1969 = vshrl.u32 %v1968, 7
          %v1970 = vsub.s32 0, %v1969
          %v1971 = vrot.slane %v1966, %v1970
          %vm1973 = vcmask 687104
          %v1975 = vsel %vm1973, %v1954, 0
          %vm1977 = vcmask 1043456
          %v1979 = vsel %vm1977, %v1965, 0
          %1981 = vmatprep.subr.mxu0 0.0
          %1982 = vmatpush1.msra.mxu0 %v1955
          %1983 = vmatprep.subr.mxu0 0.0
          %1984 = vmatpush1.msra.mxu0 %v1956
          %1985 = vmatprep.subr.mxu0 0.0
          %1986 = vmatpush1.msra.mxu0 %v1957
          %1987 = vmatprep.subr.mxu0 0.0
          %1988 = vmatpush1.msra.mxu0 %v1958
          %1989 = vmatprep.subr.mxu0 0.0
          %1990 = vmatpush1.msra.mxu0 %v1959
          %1991 = vmatprep.subr.mxu0 0.0
          %1992 = vmatpush1.msra.mxu0 %v1960
          %1993 = vmatprep.subr.mxu0 0.0
          %1994 = vmatpush1.msra.mxu0 %v1961
          %1995 = vmatprep.subr.mxu0 0.0
          %1996 = vmatpush1.msra.mxu0 %v1962
          %1997 = vmatprep.subr.mxu0 0.0
          %1998 = vmatpush1.msra.mxu0 %v1963
          %1999 = vmatprep.subr.mxu0 0.0
          %2000 = vmatpush1.msra.mxu0 %v1964
          %2001 = vmatprep.subr.mxu0 0.0
          %2002 = vmatpush1.msra.mxu0 %v1979
          %2003 = vmatprep.subr.mxu0 0.0
          %2004 = vmatpush1.msra.mxu0 0.0
          %2005 = vmatprep.subr.mxu0 0.0
          %2006 = vmatpush1.msra.mxu0 0.0
          %2007 = vmatprep.subr.mxu0 0.0
          %2008 = vmatpush1.msra.mxu0 0.0
          %2009 = vmatprep.subr.mxu0 0.0
          %2010 = vmatpush1.msra.mxu0 0.0
          %2011 = vmatprep.subr.mxu0 0.0
          %2012 = vmatpush1.msra.mxu0 0.0
          %2013 = vmatprep.subr.mxu0 0.0
          %2014 = vmatpush1.msra.mxu0 0.0
          %2015 = vmatprep.subr.mxu0 0.0
          %2016 = vmatpush1.msra.mxu0 0.0
          %2017 = vmatprep.subr.mxu0 0.0
          %2018 = vmatpush1.msra.mxu0 0.0
          %2019 = vmatprep.subr.mxu0 0.0
          %2020 = vmatpush1.msra.mxu0 0.0
          %2021 = vmatprep.subr.mxu0 0.0
          %2022 = vmatpush1.msra.mxu0 0.0
          %2023 = vmatprep.subr.mxu0 0.0
          %2024 = vmatpush1.msra.mxu0 0.0
          %2025 = vmatprep.subr.mxu0 0.0
          %2026 = vmatpush1.msra.mxu0 0.0
          %2027 = vmatprep.subr.mxu0 0.0
          %2028 = vmatpush1.msra.mxu0 0.0
          %2029 = vmatprep.subr.mxu0 0.0
          %2030 = vmatpush1.msra.mxu0 0.0
          %2031 = vmatprep.subr.mxu0 0.0
          %2032 = vmatpush1.msra.mxu0 0.0
          %2033 = vmatprep.subr.mxu0 0.0
          %2034 = vmatpush1.msra.mxu0 0.0
          %2035 = vmatprep.subr.mxu0 0.0
          %2036 = vmatpush1.msra.mxu0 0.0
          %2037 = vmatprep.subr.mxu0 0.0
          %2038 = vmatpush1.msra.mxu0 0.0
          %2039 = vmatprep.subr.mxu0 0.0
          %2040 = vmatpush1.msra.mxu0 0.0
          %2041 = vmatprep.subr.mxu0 0.0
          %2042 = vmatpush1.msra.mxu0 0.0
          %2043 = vmatprep.subr.mxu0 0.0
          %2044 = vmatpush1.msra.mxu0 0.0
          %2045 = vmatprep.mubr.f32.mxu0 0.0
          %2046 = vmatmul.mubr.f32.gmra.mrb[0].mxu0 %v1975
          %v2047 = vpop.f32.mrb[0].mxu0
          %v2048 = vadd.f32 %v1971, %v2047
          %v2049 = vpop.f32.mrb[0].mxu0
          %2050 = vdwg.mxu0
          %v2051 = vmax.f32 %v2048, 0.0
          %v2052 = vld [vmem:[%s7] sm:$0xff]
          %v2053 = vld [vmem:[%s7 + $0x8] sm:$0xff]
          %v2054 = vld [vmem:[%s7 + $0x10] sm:$0xff]
          %v2055 = vld [vmem:[%s7 + $0x18] sm:$0xff]
          %v2056 = vld [vmem:[%s8] sm:$0x1]
          %v2058 = vlaneseq
          %v2059 = vshrl.u32 %v2058, 7
          %v2060 = vsub.s32 0, %v2059
          %v2061 = vrot.slane %v2056, %v2060
          %vm2063 = vcmask 261120
          %v2065 = vsel %vm2063, %v2051, 0
          %2067 = vmatprep.subr.mxu0 0.0
          %2068 = vmatpush1.msra.mxu0 %v2052
          %2069 = vmatprep.subr.mxu0 0.0
          %2070 = vmatpush1.msra.mxu0 %v2053
          %2071 = vmatprep.subr.mxu0 0.0
          %2072 = vmatpush1.msra.mxu0 %v2054
          %2073 = vmatprep.subr.mxu0 0.0
          %2074 = vmatpush1.msra.mxu0 %v2055
          %2075 = vmatprep.subr.mxu0 0.0
          %2076 = vmatpush1.msra.mxu0 0.0
          %2077 = vmatprep.subr.mxu0 0.0
          %2078 = vmatpush1.msra.mxu0 0.0
          %2079 = vmatprep.subr.mxu0 0.0
          %2080 = vmatpush1.msra.mxu0 0.0
          %2081 = vmatprep.subr.mxu0 0.0
          %2082 = vmatpush1.msra.mxu0 0.0
          %2083 = vmatprep.subr.mxu0 0.0
          %2084 = vmatpush1.msra.mxu0 0.0
          %2085 = vmatprep.subr.mxu0 0.0
          %2086 = vmatpush1.msra.mxu0 0.0
          %2087 = vmatprep.subr.mxu0 0.0
          %2088 = vmatpush1.msra.mxu0 0.0
          %2089 = vmatprep.subr.mxu0 0.0
          %2090 = vmatpush1.msra.mxu0 0.0
          %2091 = vmatprep.subr.mxu0 0.0
          %2092 = vmatpush1.msra.mxu0 0.0
          %2093 = vmatprep.subr.mxu0 0.0
          %2094 = vmatpush1.msra.mxu0 0.0
          %2095 = vmatprep.subr.mxu0 0.0
          %2096 = vmatpush1.msra.mxu0 0.0
          %2097 = vmatprep.subr.mxu0 0.0
          %2098 = vmatpush1.msra.mxu0 0.0
          %2099 = vmatprep.subr.mxu0 0.0
          %2100 = vmatpush1.msra.mxu0 0.0
          %2101 = vmatprep.subr.mxu0 0.0
          %2102 = vmatpush1.msra.mxu0 0.0
          %2103 = vmatprep.subr.mxu0 0.0
          %2104 = vmatpush1.msra.mxu0 0.0
          %2105 = vmatprep.subr.mxu0 0.0
          %2106 = vmatpush1.msra.mxu0 0.0
          %2107 = vmatprep.subr.mxu0 0.0
          %2108 = vmatpush1.msra.mxu0 0.0
          %2109 = vmatprep.subr.mxu0 0.0
          %2110 = vmatpush1.msra.mxu0 0.0
          %2111 = vmatprep.subr.mxu0 0.0
          %2112 = vmatpush1.msra.mxu0 0.0
          %2113 = vmatprep.subr.mxu0 0.0
          %2114 = vmatpush1.msra.mxu0 0.0
          %2115 = vmatprep.subr.mxu0 0.0
          %2116 = vmatpush1.msra.mxu0 0.0
          %2117 = vmatprep.subr.mxu0 0.0
          %2118 = vmatpush1.msra.mxu0 0.0
          %2119 = vmatprep.subr.mxu0 0.0
          %2120 = vmatpush1.msra.mxu0 0.0
          %2121 = vmatprep.subr.mxu0 0.0
          %2122 = vmatpush1.msra.mxu0 0.0
          %2123 = vmatprep.subr.mxu0 0.0
          %2124 = vmatpush1.msra.mxu0 0.0
          %2125 = vmatprep.subr.mxu0 0.0
          %2126 = vmatpush1.msra.mxu0 0.0
          %2127 = vmatprep.subr.mxu0 0.0
          %2128 = vmatpush1.msra.mxu0 0.0
          %2129 = vmatprep.subr.mxu0 0.0
          %2130 = vmatpush1.msra.mxu0 0.0
          %2131 = vmatprep.mubr.f32.mxu0 0.0
          %2132 = vmatmul.mubr.f32.gmra.mrb[0].mxu0 %v2065
          %v2133 = vpop.f32.mrb[0].mxu0
          %v2134 = vadd.f32 %v2061, %v2133
          %v2135 = vpop.f32.mrb[0].mxu0
          %2136 = vdwg.mxu0
          %vm2137 = vcmask 9216
          %2138 = vst.msk [vmem:[#allocation3] sm:$0x3] %vm2137, %v2134
        $region64: #{tpu_custom_call.1} parent=55 // pred_fallthru
          _
        // Predicated region
        $region65: #{tpu_custom_call.1} parent=55 // pred_check
          %p2139 = pneg %p252
        $region66: #{tpu_custom_call.1} parent=55 // pred_check_branch
          %2141 = sbr.rel (%p2139) target = $region68
        $region67: #{tpu_custom_call.1} parent=55 // pred_region
          %s2143 = ssub.s32 32, 32
          %2144 = vsyncadd [#allocation4], %s2143
          %s2145 = smul.addr %s25, 32
          %s2146 = scalar_lea.hbm %s9, %s2145
          %s2148 = sshll.u32 [#allocation3], 4
          %s2149 = int_to_ptr.vmem [resolvable:$true] %s2148
          %2151 = dma.vmem_to_hbm [thread:$0]  %s2149, 32, %s2146, [#allocation4]
        $region68: #{tpu_custom_call.1} parent=55 // pred_fallthru
          _
        // Predicated region
        $region69: #{tpu_custom_call.1} parent=55 // pred_check
          %p2152 = pneg %p252
        $region70: #{tpu_custom_call.1} parent=55 // pred_check_branch
          %2154 = sbr.rel (%p2152) target = $region72
        $region71: #{tpu_custom_call.1} parent=55 // pred_region
          %2155 = dma.done [#allocation4], 32
        $region72: #{tpu_custom_call.1} parent=55 // pred_fallthru
          _
      $region56: #{tpu_custom_call.1} parent=5 // pred_fallthru
        _
      %p2156 = scmp.le.s32.totalorder 2, %s16
      // Predicated region
      $region73: #{tpu_custom_call.1} parent=5 // pred_check
        %p2157 = pneg %p2156
      $region74: #{tpu_custom_call.1} parent=5 // pred_check_branch
        %2159 = sbr.rel (%p2157) target = $region76
      $region75: #{tpu_custom_call.1} parent=5 // pred_region
        %s2160 = ssub.s32 %s16, 2
      $region76: #{tpu_custom_call.1} parent=5 // pred_fallthru
        _
    $region6: #{tpu_custom_call.1} parent=1 // loop_footer
      %s20 = sadd.s32 1, %s16
    $region7: #{tpu_custom_call.1} parent=1 // loop_footer_branch
      %15 = sbr.rel target = $region3
    $region8: #{tpu_custom_call.1} parent=1 // loop_exit
      _
    %2161 = vsyncpa [#allocation4], 1
    %s2162 = scalar_lea.sflag [#allocation4], 1
    %2163 = vsyncpa %s2162, 1

</llo_original>
